<compile_context>
chip_gen: v5e
topology: v5e:2x2
jax: 0.10.0
libtpu: 0.0.40
codegen_flags: <defaults>
</compile_context>

<pallas_src>
import functools

import numpy as np
import jax
import jax.numpy as jnp
from jax import lax
from jax.experimental import pallas as pl
from jax.experimental.pallas import tpu as pltpu


# --------------------------------------------------------------------------
# In-kernel helpers
# --------------------------------------------------------------------------

def _conv3(src_ref, w_ref, widx, bias, Ho, stride):
    """3x3 conv as 3 banded matmuls (one per kernel row kh).

    src_ref : [Hp, Wp*Cin] f32 VMEM scratch holding the spatially padded slab.
    w_ref   : [..., 3, Wp*Cin, Wo*Cout] bf16 banded weights (BN scale folded).
    bias    : [1, Wo*Cout] f32 (BN shift tiled over Wo).
    returns : [Ho, Wo*Cout] f32.
    """
    acc = bias
    for kh in range(3):
        if stride == 1:
            slab = src_ref[kh:kh + Ho, :]
        else:
            slab = src_ref[pl.ds(kh, Ho, stride), :]      # strided row gather
        w = w_ref[(*widx, kh)]
        acc = acc + jnp.dot(slab.astype(jnp.bfloat16), w,
                            preferred_element_type=jnp.float32)
    return acc


def _blocks_kernel(*refs, nb, stride, Hin, Win, Cin, Cout, proj):
    Ho, Wo = Hin // stride, Win // stride

    n_in = 5 + (2 if proj else 0) + (4 if nb > 1 else 0)
    x_ref, b1w_ref, b1b_ref, b2w_ref, b2b_ref = refs[:5]
    k = 5
    if proj:
        sw_ref, sb_ref = refs[k:k + 2]
        k += 2
    if nb > 1:
        r1w_ref, r1b_ref, r2w_ref, r2b_ref = refs[k:k + 4]
        k += 4
    o_ref = refs[n_in]
    xp_ref, hp_ref = refs[n_in + 1], refs[n_in + 2]

    # Zero the padded scratch slabs once; only their interiors are rewritten.
    xp_ref[...] = jnp.zeros_like(xp_ref)
    hp_ref[...] = jnp.zeros_like(hp_ref)

    # ---- block 0: conv1 (3x3, stride) + BN + ReLU --------------------------
    xin = x_ref[0]                                        # [Hin, Win*Cin] bf16
    xp_ref[1:Hin + 1, Cin:(Win + 1) * Cin] = xin.astype(xp_ref.dtype)
    h = jnp.maximum(_conv3(xp_ref, b1w_ref, (), b1b_ref[...], Ho, stride), 0.0)

    # ---- block 0: shortcut ---------------------------------------------------
    if proj:
        if stride == 1:
            center = xp_ref[1:Ho + 1, :]
        else:
            center = xp_ref[pl.ds(1, Ho, stride), :]
        sc = jnp.dot(center.astype(jnp.bfloat16), sw_ref[...],
                     preferred_element_type=jnp.float32) + sb_ref[...]
    else:
        sc = xin.astype(jnp.float32)          # identity (stride==1, Cin==Cout)

    # ---- block 0: conv2 (3x3, 1) + BN + residual + ReLU ----------------------
    hp_ref[1:Ho + 1, Cout:(Wo + 1) * Cout] = h.astype(hp_ref.dtype)
    a = jnp.maximum(_conv3(hp_ref, b2w_ref, (), b2b_ref[...], Ho, 1) + sc, 0.0)

    # ---- remaining stride-1 identity blocks (kept entirely in VMEM) ---------
    for i in range(nb - 1):
        hp_ref[1:Ho + 1, Cout:(Wo + 1) * Cout] = a.astype(hp_ref.dtype)
        h = jnp.maximum(_conv3(hp_ref, r1w_ref, (i,), r1b_ref[i], Ho, 1), 0.0)
        hp_ref[1:Ho + 1, Cout:(Wo + 1) * Cout] = h.astype(hp_ref.dtype)
        a = jnp.maximum(_conv3(hp_ref, r2w_ref, (i,), r2b_ref[i], Ho, 1) + a, 0.0)

    o_ref[0] = a.astype(o_ref.dtype)


# --------------------------------------------------------------------------
# pallas_call wrapper
# --------------------------------------------------------------------------

def _run_container(x2d, prep, *, nb, stride, Hin, Win, Cin, Cout, proj):
    N = x2d.shape[0]
    Ho, Wo = Hin // stride, Win // stride
    Nt = Wo * Cout
    Kin = (Win + 2) * Cin
    Kh = (Wo + 2) * Cout

    inputs = [x2d, prep["b0_w1"], prep["b0_b1"], prep["b0_w2"], prep["b0_b2"]]
    in_specs = [
        pl.BlockSpec((1, Hin, Win * Cin), lambda n: (n, 0, 0)),
        pl.BlockSpec((3, Kin, Nt), lambda n: (0, 0, 0)),
        pl.BlockSpec((1, Nt), lambda n: (0, 0)),
        pl.BlockSpec((3, Kh, Nt), lambda n: (0, 0, 0)),
        pl.BlockSpec((1, Nt), lambda n: (0, 0)),
    ]
    if proj:
        inputs += [prep["b0_ws"], prep["b0_bs"]]
        in_specs += [pl.BlockSpec((Kin, Nt), lambda n: (0, 0)),
                     pl.BlockSpec((1, Nt), lambda n: (0, 0))]
    if nb > 1:
        inputs += [prep["r_w1"], prep["r_b1"], prep["r_w2"], prep["r_b2"]]
        in_specs += [pl.BlockSpec((nb - 1, 3, Kh, Nt), lambda n: (0, 0, 0, 0)),
                     pl.BlockSpec((nb - 1, 1, Nt), lambda n: (0, 0, 0)),
                     pl.BlockSpec((nb - 1, 3, Kh, Nt), lambda n: (0, 0, 0, 0)),
                     pl.BlockSpec((nb - 1, 1, Nt), lambda n: (0, 0, 0))]

    kernel = functools.partial(_blocks_kernel, nb=nb, stride=stride, Hin=Hin,
                               Win=Win, Cin=Cin, Cout=Cout, proj=proj)

    return pl.pallas_call(
        kernel,
        out_shape=jax.ShapeDtypeStruct((N, Ho, Nt), jnp.bfloat16),
        grid=(N,),
        in_specs=in_specs,
        out_specs=pl.BlockSpec((1, Ho, Nt), lambda n: (n, 0, 0)),
        scratch_shapes=[
            pltpu.VMEM((Hin + 2, (Win + 2) * Cin), jnp.float32),  # padded x
            pltpu.VMEM((Ho + 2, (Wo + 2) * Cout), jnp.float32),   # padded h
        ],
        compiler_params=pltpu.CompilerParams(
            dimension_semantics=("parallel",)),
    )(*inputs)


# --------------------------------------------------------------------------
# Host-side (one-time) weight preparation: fold BN, build banded matmul weights
# --------------------------------------------------------------------------

def _fold_bn(gamma, beta, mean, var, eps=1e-5):
    scale = gamma / jnp.sqrt(var + eps)
    shift = beta - mean * scale
    return scale, shift


def _band_3x3(w, scale, win, stride):
    """w: [3,3,Cin,Cout] -> banded [3, (win+2)*Cin, (win//stride)*Cout] bf16."""
    cin, cout = w.shape[2], w.shape[3]
    wp, wo = win + 2, win // stride
    mask = np.zeros((wp, wo, 3), np.float32)
    for o in range(wo):
        for q in range(3):
            mask[stride * o + q, o, q] = 1.0
    wf = w * scale[None, None, None, :]
    band = jnp.einsum("poq,kqic->kpioc", jnp.asarray(mask), wf)
    return band.reshape(3, wp * cin, wo * cout).astype(jnp.bfloat16)


def _band_1x1(w, scale, win, stride):
    """w: [Cin,Cout] -> banded [(win+2)*Cin, (win//stride)*Cout] bf16."""
    cin, cout = w.shape
    wp, wo = win + 2, win // stride
    mask = np.zeros((wp, wo), np.float32)
    for o in range(wo):
        mask[stride * o + 1, o] = 1.0
    wf = w * scale[None, :]
    band = jnp.einsum("po,ic->pioc", jnp.asarray(mask), wf)
    return band.reshape(wp * cin, wo * cout).astype(jnp.bfloat16)


def _tile_shift(shift, wo):
    return jnp.tile(shift, wo).reshape(1, -1).astype(jnp.float32)


def _prepare_weights(params, Hin, Win):
    blk0 = params[0]
    s = blk0["stride"]
    Wo = Win // s
    prep = {
        "b0_w1": _band_3x3(blk0["w1"], blk0["s1"], Win, s),
        "b0_b1": _tile_shift(blk0["b1"], Wo),
        "b0_w2": _band_3x3(blk0["w2"], blk0["s2"], Wo, 1),
        "b0_b2": _tile_shift(blk0["b2"], Wo),
    }
    if blk0["proj"]:
        prep["b0_ws"] = _band_1x1(blk0["ws"], blk0["ss"], Win, s)
        prep["b0_bs"] = _tile_shift(blk0["bs"], Wo)
    if len(params) > 1:
        prep["r_w1"] = jnp.stack([_band_3x3(p["w1"], p["s1"], Wo, 1)
                                  for p in params[1:]])
        prep["r_b1"] = jnp.stack([_tile_shift(p["b1"], Wo) for p in params[1:]])
        prep["r_w2"] = jnp.stack([_band_3x3(p["w2"], p["s2"], Wo, 1)
                                  for p in params[1:]])
        prep["r_b2"] = jnp.stack([_tile_shift(p["b2"], Wo) for p in params[1:]])
    return prep


# --------------------------------------------------------------------------
# Parameter init (mirrors the PyTorch module's random init, BN folded)
# --------------------------------------------------------------------------

def _init_conv(key, kh, kw, cin, cout, init_factor):
    fan_in = kh * kw * cin
    std = init_factor * (2.0 / fan_in) ** 0.5
    return jax.random.normal(key, (kh, kw, cin, cout), jnp.float32) * std


def _init_bn(key, c):
    k1, k2, k3, k4 = jax.random.split(key, 4)
    gamma = 1.0 + 0.05 * jax.random.normal(k1, (c,), jnp.float32)
    beta = 0.05 * jax.random.normal(k2, (c,), jnp.float32)
    mean = 0.05 * jax.random.normal(k3, (c,), jnp.float32)
    var = 1.0 + 0.05 * jax.random.uniform(k4, (c,), jnp.float32)
    return _fold_bn(gamma, beta, mean, var)


def init_basic_block(key, cin, cout, stride, init_factor=0.2):
    keys = jax.random.split(key, 6)
    s1, b1 = _init_bn(keys[1], cout)
    s2, b2 = _init_bn(keys[3], cout)
    p = {
        "w1": _init_conv(keys[0], 3, 3, cin, cout, init_factor),
        "s1": s1, "b1": b1,
        "w2": _init_conv(keys[2], 3, 3, cout, cout, init_factor),
        "s2": s2, "b2": b2,
        "stride": stride, "cin": cin, "cout": cout,
        "proj": (stride != 1 or cin != cout),
    }
    if p["proj"]:
        ss, bs = _init_bn(keys[5], cout)
        p["ws"] = _init_conv(keys[4], 1, 1, cin, cout, init_factor).reshape(cin, cout)
        p["ss"], p["bs"] = ss, bs
    return p


def init_blocks_container(key, in_channels, out_channels, num_blocks, stride,
                          init_factor=0.2):
    strides = [stride] + [1] * (num_blocks - 1)
    params, cin = [], in_channels
    for s in strides:
        key, sub = jax.random.split(key)
        params.append(init_basic_block(sub, cin, out_channels, s, init_factor))
        cin = out_channels  # BasicBlock expansion == 1
    return params


# --------------------------------------------------------------------------
# Forward (wrapper: layout plumbing only) + pure-JAX reference
# --------------------------------------------------------------------------

def blocks_container_forward(x_nchw, params):
    N, Cin, H, W = x_nchw.shape
    blk0 = params[0]
    nb, stride, Cout, proj = len(params), blk0["stride"], blk0["cout"], blk0["proj"]
    assert H % stride == 0 and W % stride == 0
    Ho, Wo = H // stride, W // stride

    # Layout plumbing: NCHW -> [N, H, W*C] bf16 (lane-folded activation layout).
    x2d = jnp.transpose(x_nchw, (0, 2, 3, 1)).reshape(N, H, W * Cin)
    x2d = x2d.astype(jnp.bfloat16)

    prep = _prepare_weights(params, H, W)   # one-time param transform
    out2d = _run_container(x2d, prep, nb=nb, stride=stride, Hin=H, Win=W,
                           Cin=Cin, Cout=Cout, proj=proj)
    out = out2d.reshape(N, Ho, Wo, Cout).astype(jnp.float32)
    return jnp.transpose(out, (0, 3, 1, 2))


def reference_forward(x_nchw, params):
    x = jnp.transpose(x_nchw, (0, 2, 3, 1)).astype(jnp.float32)
    dn = ("NHWC", "HWIO", "NHWC")
    for p in params:
        s = p["stride"]
        w1 = p["w1"] * p["s1"][None, None, None, :]
        y = lax.conv_general_dilated(x, w1, (s, s), ((1, 1), (1, 1)),
                                     dimension_numbers=dn)
        y = jnp.maximum(y + p["b1"], 0.0)
        w2 = p["w2"] * p["s2"][None, None, None, :]
        z = lax.conv_general_dilated(y, w2, (1, 1), ((1, 1), (1, 1)),
                                     dimension_numbers=dn) + p["b2"]
        if p["proj"]:
            ws = (p["ws"] * p["ss"][None, :])[None, None, :, :]
            sc = lax.conv_general_dilated(x, ws, (s, s), ((0, 0), (0, 0)),
                                          dimension_numbers=dn) + p["bs"]
        else:
            sc = x
        x = jnp.maximum(z + sc, 0.0)
    return jnp.transpose(x, (0, 3, 1, 2))


# --------------------------------- main -------------------------------------

if __name__ == "__main__":
    key = jax.random.PRNGKey(0)
    k_x, k_p = jax.random.split(key)

    # Small shapes consistent with the module: batch=2, Cin=4, 16x16 spatial.
    N, Cin, H, W = 2, 4, 16, 16
    Cout, num_blocks, stride = 8, 2, 2

    x = jax.random.normal(k_x, (N, Cin, H, W), jnp.float32)
    params = init_blocks_container(k_p, Cin, Cout, num_blocks, stride,
                                   init_factor=0.2)

    fwd = jax.jit(lambda xi: blocks_container_forward(xi, params))
    out = jax.block_until_ready(fwd(x))

    assert out.shape == (N, Cout, H // stride, W // stride), out.shape
    assert bool(jnp.all(jnp.isfinite(out)))

    # bf16 fused kernel vs f32 XLA reference (loose tol for bf16 weights/acts).
    ref = reference_forward(x, params)
    err = float(jnp.max(jnp.abs(out - ref)))
    assert err < 0.15, f"max abs err {err}"

    print("KERNEL_OK")
</pallas_src>

<mosaic_0001>
module attributes {stable_mosaic.version = 11 : i64} {
  func.func @_blocks_kernel(%arg0: i32, %arg1: memref<1x16x64xbf16, #tpu.memory_space<vmem>>, %arg2: memref<3x72x64xbf16, #tpu.memory_space<vmem>>, %arg3: memref<1x64xf32, #tpu.memory_space<vmem>>, %arg4: memref<3x80x64xbf16, #tpu.memory_space<vmem>>, %arg5: memref<1x64xf32, #tpu.memory_space<vmem>>, %arg6: memref<72x64xbf16, #tpu.memory_space<vmem>>, %arg7: memref<1x64xf32, #tpu.memory_space<vmem>>, %arg8: memref<1x3x80x64xbf16, #tpu.memory_space<vmem>>, %arg9: memref<1x1x64xf32, #tpu.memory_space<vmem>>, %arg10: memref<1x3x80x64xbf16, #tpu.memory_space<vmem>>, %arg11: memref<1x1x64xf32, #tpu.memory_space<vmem>>, %arg12: memref<1x8x64xbf16, #tpu.memory_space<vmem>>, %arg13: memref<18x72xf32, #tpu.memory_space<vmem>>, %arg14: memref<10x80xf32, #tpu.memory_space<vmem>>) attributes {dimension_semantics = [#tpu.dimension_semantics<parallel>], iteration_bounds = array<i64: 2>, scalar_prefetch = 0 : i64, scratch_operands = 2 : i64, tpu.core_type = #tpu.core_type<tc>, window_params = [{transform_indices = @transform_0, window_bounds = array<i64: 1, 16, 64>}, {pipeline_mode = #tpu.pipeline_mode<synchronous>, transform_indices = @transform_1, window_bounds = array<i64: 3, 72, 64>}, {pipeline_mode = #tpu.pipeline_mode<synchronous>, transform_indices = @transform_2, window_bounds = array<i64: 1, 64>}, {pipeline_mode = #tpu.pipeline_mode<synchronous>, transform_indices = @transform_3, window_bounds = array<i64: 3, 80, 64>}, {pipeline_mode = #tpu.pipeline_mode<synchronous>, transform_indices = @transform_4, window_bounds = array<i64: 1, 64>}, {pipeline_mode = #tpu.pipeline_mode<synchronous>, transform_indices = @transform_5, window_bounds = array<i64: 72, 64>}, {pipeline_mode = #tpu.pipeline_mode<synchronous>, transform_indices = @transform_6, window_bounds = array<i64: 1, 64>}, {pipeline_mode = #tpu.pipeline_mode<synchronous>, transform_indices = @transform_7, window_bounds = array<i64: 1, 3, 80, 64>}, {pipeline_mode = #tpu.pipeline_mode<synchronous>, transform_indices = @transform_8, window_bounds = array<i64: 1, 1, 64>}, {pipeline_mode = #tpu.pipeline_mode<synchronous>, transform_indices = @transform_9, window_bounds = array<i64: 1, 3, 80, 64>}, {pipeline_mode = #tpu.pipeline_mode<synchronous>, transform_indices = @transform_10, window_bounds = array<i64: 1, 1, 64>}, {transform_indices = @transform_11, window_bounds = array<i64: 1, 8, 64>}]} {
    %cst = arith.constant 0.000000e+00 : f32
    %0 = vector.broadcast %cst : f32 to vector<18x72xf32>
    %c0 = arith.constant 0 : index
    %c0_0 = arith.constant 0 : index
    %1 = vector.load %arg13[%c0, %c0_0] : memref<18x72xf32, #tpu.memory_space<vmem>>, vector<18x72xf32>
    tpu.vector_store %arg13[%c0, %c0_0], %0 {strides = array<i32>} : memref<18x72xf32, #tpu.memory_space<vmem>>, vector<18x72xf32>,
    %cst_1 = arith.constant 0.000000e+00 : f32
    %2 = vector.broadcast %cst_1 : f32 to vector<10x80xf32>
    %c0_2 = arith.constant 0 : index
    %c0_3 = arith.constant 0 : index
    %3 = vector.load %arg14[%c0_2, %c0_3] : memref<10x80xf32, #tpu.memory_space<vmem>>, vector<10x80xf32>
    tpu.vector_store %arg14[%c0_2, %c0_3], %2 {strides = array<i32>} : memref<10x80xf32, #tpu.memory_space<vmem>>, vector<10x80xf32>,
    %c0_4 = arith.constant 0 : index
    %c0_5 = arith.constant 0 : index
    %c0_6 = arith.constant 0 : index
    %4 = vector.load %arg1[%c0_4, %c0_5, %c0_6] : memref<1x16x64xbf16, #tpu.memory_space<vmem>>, vector<1x16x64xbf16>
    %5 = vector.shape_cast %4 : vector<1x16x64xbf16> to vector<16x64xbf16>
    %6 = arith.extf %5 : vector<16x64xbf16> to vector<16x64xf32>
    %c1 = arith.constant 1 : index
    %c4 = arith.constant 4 : index
    %7 = vector.load %arg13[%c1, %c4] : memref<18x72xf32, #tpu.memory_space<vmem>>, vector<16x64xf32>
    tpu.vector_store %arg13[%c1, %c4], %6 {strides = array<i32>} : memref<18x72xf32, #tpu.memory_space<vmem>>, vector<16x64xf32>,
    %c0_7 = arith.constant 0 : index
    %c0_8 = arith.constant 0 : index
    %8 = vector.load %arg3[%c0_7, %c0_8] : memref<1x64xf32, #tpu.memory_space<vmem>>, vector<1x64xf32>
    %c0_9 = arith.constant 0 : index
    %c0_10 = arith.constant 0 : index
    %9 = tpu.strided_load %arg13[%c0_9, %c0_10] {strides = array<i32: 2, 1>} : memref<18x72xf32, #tpu.memory_space<vmem>>, vector<8x72xf32>
    %c0_11 = arith.constant 0 : index
    %c0_12 = arith.constant 0 : index
    %c0_13 = arith.constant 0 : index
    %10 = vector.load %arg2[%c0_11, %c0_12, %c0_13] : memref<3x72x64xbf16, #tpu.memory_space<vmem>>, vector<1x72x64xbf16>
    %11 = vector.shape_cast %10 : vector<1x72x64xbf16> to vector<72x64xbf16>
    %12 = arith.truncf %9 : vector<8x72xf32> to vector<8x72xbf16>
    %cst_14 = arith.constant dense<0.000000e+00> : vector<8x64xf32>
    %13 = tpu.matmul %12, %11, %cst_14 {dimension_numbers = #tpu.dot_dimension_numbers<[1], [0], [0], [1], [0, 0, 1, 1], [], []>} : vector<8x72xbf16>, vector<72x64xbf16>, vector<8x64xf32> -> vector<8x64xf32>
    %14 = vector.broadcast %8 : vector<1x64xf32> to vector<8x64xf32>
    %15 = arith.addf %14, %13 : vector<8x64xf32>
    %c1_15 = arith.constant 1 : index
    %c0_16 = arith.constant 0 : index
    %16 = tpu.strided_load %arg13[%c1_15, %c0_16] {strides = array<i32: 2, 1>} : memref<18x72xf32, #tpu.memory_space<vmem>>, vector<8x72xf32>
    %c1_17 = arith.constant 1 : index
    %c0_18 = arith.constant 0 : index
    %c0_19 = arith.constant 0 : index
    %17 = vector.load %arg2[%c1_17, %c0_18, %c0_19] : memref<3x72x64xbf16, #tpu.memory_space<vmem>>, vector<1x72x64xbf16>
    %18 = vector.shape_cast %17 : vector<1x72x64xbf16> to vector<72x64xbf16>
    %19 = arith.truncf %16 : vector<8x72xf32> to vector<8x72xbf16>
    %cst_20 = arith.constant dense<0.000000e+00> : vector<8x64xf32>
    %20 = tpu.matmul %19, %18, %cst_20 {dimension_numbers = #tpu.dot_dimension_numbers<[1], [0], [0], [1], [0, 0, 1, 1], [], []>} : vector<8x72xbf16>, vector<72x64xbf16>, vector<8x64xf32> -> vector<8x64xf32>
    %21 = arith.addf %15, %20 : vector<8x64xf32>
    %c2 = arith.constant 2 : index
    %c0_21 = arith.constant 0 : index
    %22 = tpu.strided_load %arg13[%c2, %c0_21] {strides = array<i32: 2, 1>} : memref<18x72xf32, #tpu.memory_space<vmem>>, vector<8x72xf32>
    %c2_22 = arith.constant 2 : index
    %c0_23 = arith.constant 0 : index
    %c0_24 = arith.constant 0 : index
    %23 = vector.load %arg2[%c2_22, %c0_23, %c0_24] : memref<3x72x64xbf16, #tpu.memory_space<vmem>>, vector<1x72x64xbf16>
    %24 = vector.shape_cast %23 : vector<1x72x64xbf16> to vector<72x64xbf16>
    %25 = arith.truncf %22 : vector<8x72xf32> to vector<8x72xbf16>
    %cst_25 = arith.constant dense<0.000000e+00> : vector<8x64xf32>
    %26 = tpu.matmul %25, %24, %cst_25 {dimension_numbers = #tpu.dot_dimension_numbers<[1], [0], [0], [1], [0, 0, 1, 1], [], []>} : vector<8x72xbf16>, vector<72x64xbf16>, vector<8x64xf32> -> vector<8x64xf32>
    %27 = arith.addf %21, %26 : vector<8x64xf32>
    %cst_26 = arith.constant 0.000000e+00 : f32
    %28 = vector.broadcast %cst_26 : f32 to vector<8x64xf32>
    %29 = arith.maximumf %27, %28 : vector<8x64xf32>
    %c1_27 = arith.constant 1 : index
    %c0_28 = arith.constant 0 : index
    %30 = tpu.strided_load %arg13[%c1_27, %c0_28] {strides = array<i32: 2, 1>} : memref<18x72xf32, #tpu.memory_space<vmem>>, vector<8x72xf32>
    %31 = arith.truncf %30 : vector<8x72xf32> to vector<8x72xbf16>
    %c0_29 = arith.constant 0 : index
    %c0_30 = arith.constant 0 : index
    %32 = vector.load %arg6[%c0_29, %c0_30] : memref<72x64xbf16, #tpu.memory_space<vmem>>, vector<72x64xbf16>
    %cst_31 = arith.constant dense<0.000000e+00> : vector<8x64xf32>
    %33 = tpu.matmul %31, %32, %cst_31 {dimension_numbers = #tpu.dot_dimension_numbers<[1], [0], [0], [1], [0, 0, 1, 1], [], []>} : vector<8x72xbf16>, vector<72x64xbf16>, vector<8x64xf32> -> vector<8x64xf32>
    %c0_32 = arith.constant 0 : index
    %c0_33 = arith.constant 0 : index
    %34 = vector.load %arg7[%c0_32, %c0_33] : memref<1x64xf32, #tpu.memory_space<vmem>>, vector<1x64xf32>
    %35 = vector.broadcast %34 : vector<1x64xf32> to vector<8x64xf32>
    %36 = arith.addf %33, %35 : vector<8x64xf32>
    %c1_34 = arith.constant 1 : index
    %c8 = arith.constant 8 : index
    %37 = vector.load %arg14[%c1_34, %c8] : memref<10x80xf32, #tpu.memory_space<vmem>>, vector<8x64xf32>
    tpu.vector_store %arg14[%c1_34, %c8], %29 {strides = array<i32>} : memref<10x80xf32, #tpu.memory_space<vmem>>, vector<8x64xf32>,
    %c0_35 = arith.constant 0 : index
    %c0_36 = arith.constant 0 : index
    %38 = vector.load %arg5[%c0_35, %c0_36] : memref<1x64xf32, #tpu.memory_space<vmem>>, vector<1x64xf32>
    %c0_37 = arith.constant 0 : index
    %c0_38 = arith.constant 0 : index
    %39 = vector.load %arg14[%c0_37, %c0_38] : memref<10x80xf32, #tpu.memory_space<vmem>>, vector<8x80xf32>
    %c0_39 = arith.constant 0 : index
    %c0_40 = arith.constant 0 : index
    %c0_41 = arith.constant 0 : index
    %40 = vector.load %arg4[%c0_39, %c0_40, %c0_41] : memref<3x80x64xbf16, #tpu.memory_space<vmem>>, vector<1x80x64xbf16>
    %41 = vector.shape_cast %40 : vector<1x80x64xbf16> to vector<80x64xbf16>
    %42 = arith.truncf %39 : vector<8x80xf32> to vector<8x80xbf16>
    %cst_42 = arith.constant dense<0.000000e+00> : vector<8x64xf32>
    %43 = tpu.matmul %42, %41, %cst_42 {dimension_numbers = #tpu.dot_dimension_numbers<[1], [0], [0], [1], [0, 0, 1, 1], [], []>} : vector<8x80xbf16>, vector<80x64xbf16>, vector<8x64xf32> -> vector<8x64xf32>
    %44 = vector.broadcast %38 : vector<1x64xf32> to vector<8x64xf32>
    %45 = arith.addf %44, %43 : vector<8x64xf32>
    %c1_43 = arith.constant 1 : index
    %c0_44 = arith.constant 0 : index
    %46 = vector.load %arg14[%c1_43, %c0_44] : memref<10x80xf32, #tpu.memory_space<vmem>>, vector<8x80xf32>
    %c1_45 = arith.constant 1 : index
    %c0_46 = arith.constant 0 : index
    %c0_47 = arith.constant 0 : index
    %47 = vector.load %arg4[%c1_45, %c0_46, %c0_47] : memref<3x80x64xbf16, #tpu.memory_space<vmem>>, vector<1x80x64xbf16>
    %48 = vector.shape_cast %47 : vector<1x80x64xbf16> to vector<80x64xbf16>
    %49 = arith.truncf %46 : vector<8x80xf32> to vector<8x80xbf16>
    %cst_48 = arith.constant dense<0.000000e+00> : vector<8x64xf32>
    %50 = tpu.matmul %49, %48, %cst_48 {dimension_numbers = #tpu.dot_dimension_numbers<[1], [0], [0], [1], [0, 0, 1, 1], [], []>} : vector<8x80xbf16>, vector<80x64xbf16>, vector<8x64xf32> -> vector<8x64xf32>
    %51 = arith.addf %45, %50 : vector<8x64xf32>
    %c2_49 = arith.constant 2 : index
    %c0_50 = arith.constant 0 : index
    %52 = vector.load %arg14[%c2_49, %c0_50] : memref<10x80xf32, #tpu.memory_space<vmem>>, vector<8x80xf32>
    %c2_51 = arith.constant 2 : index
    %c0_52 = arith.constant 0 : index
    %c0_53 = arith.constant 0 : index
    %53 = vector.load %arg4[%c2_51, %c0_52, %c0_53] : memref<3x80x64xbf16, #tpu.memory_space<vmem>>, vector<1x80x64xbf16>
    %54 = vector.shape_cast %53 : vector<1x80x64xbf16> to vector<80x64xbf16>
    %55 = arith.truncf %52 : vector<8x80xf32> to vector<8x80xbf16>
    %cst_54 = arith.constant dense<0.000000e+00> : vector<8x64xf32>
    %56 = tpu.matmul %55, %54, %cst_54 {dimension_numbers = #tpu.dot_dimension_numbers<[1], [0], [0], [1], [0, 0, 1, 1], [], []>} : vector<8x80xbf16>, vector<80x64xbf16>, vector<8x64xf32> -> vector<8x64xf32>
    %57 = arith.addf %51, %56 : vector<8x64xf32>
    %58 = arith.addf %57, %36 : vector<8x64xf32>
    %cst_55 = arith.constant 0.000000e+00 : f32
    %59 = vector.broadcast %cst_55 : f32 to vector<8x64xf32>
    %60 = arith.maximumf %58, %59 : vector<8x64xf32>
    %c1_56 = arith.constant 1 : index
    %c8_57 = arith.constant 8 : index
    %61 = vector.load %arg14[%c1_56, %c8_57] : memref<10x80xf32, #tpu.memory_space<vmem>>, vector<8x64xf32>
    tpu.vector_store %arg14[%c1_56, %c8_57], %60 {strides = array<i32>} : memref<10x80xf32, #tpu.memory_space<vmem>>, vector<8x64xf32>,
    %c0_58 = arith.constant 0 : index
    %c0_59 = arith.constant 0 : index
    %c0_60 = arith.constant 0 : index
    %62 = vector.load %arg9[%c0_58, %c0_59, %c0_60] : memref<1x1x64xf32, #tpu.memory_space<vmem>>, vector<1x1x64xf32>
    %63 = vector.shape_cast %62 : vector<1x1x64xf32> to vector<1x64xf32>
    %c0_61 = arith.constant 0 : index
    %c0_62 = arith.constant 0 : index
    %64 = vector.load %arg14[%c0_61, %c0_62] : memref<10x80xf32, #tpu.memory_space<vmem>>, vector<8x80xf32>
    %c0_63 = arith.constant 0 : index
    %c0_64 = arith.constant 0 : index
    %c0_65 = arith.constant 0 : index
    %c0_66 = arith.constant 0 : index
    %65 = vector.load %arg8[%c0_63, %c0_64, %c0_65, %c0_66] : memref<1x3x80x64xbf16, #tpu.memory_space<vmem>>, vector<1x1x80x64xbf16>
    %66 = vector.shape_cast %65 : vector<1x1x80x64xbf16> to vector<80x64xbf16>
    %67 = arith.truncf %64 : vector<8x80xf32> to vector<8x80xbf16>
    %cst_67 = arith.constant dense<0.000000e+00> : vector<8x64xf32>
    %68 = tpu.matmul %67, %66, %cst_67 {dimension_numbers = #tpu.dot_dimension_numbers<[1], [0], [0], [1], [0, 0, 1, 1], [], []>} : vector<8x80xbf16>, vector<80x64xbf16>, vector<8x64xf32> -> vector<8x64xf32>
    %69 = vector.broadcast %63 : vector<1x64xf32> to vector<8x64xf32>
    %70 = arith.addf %69, %68 : vector<8x64xf32>
    %c1_68 = arith.constant 1 : index
    %c0_69 = arith.constant 0 : index
    %71 = vector.load %arg14[%c1_68, %c0_69] : memref<10x80xf32, #tpu.memory_space<vmem>>, vector<8x80xf32>
    %c0_70 = arith.constant 0 : index
    %c1_71 = arith.constant 1 : index
    %c0_72 = arith.constant 0 : index
    %c0_73 = arith.constant 0 : index
    %72 = vector.load %arg8[%c0_70, %c1_71, %c0_72, %c0_73] : memref<1x3x80x64xbf16, #tpu.memory_space<vmem>>, vector<1x1x80x64xbf16>
    %73 = vector.shape_cast %72 : vector<1x1x80x64xbf16> to vector<80x64xbf16>
    %74 = arith.truncf %71 : vector<8x80xf32> to vector<8x80xbf16>
    %cst_74 = arith.constant dense<0.000000e+00> : vector<8x64xf32>
    %75 = tpu.matmul %74, %73, %cst_74 {dimension_numbers = #tpu.dot_dimension_numbers<[1], [0], [0], [1], [0, 0, 1, 1], [], []>} : vector<8x80xbf16>, vector<80x64xbf16>, vector<8x64xf32> -> vector<8x64xf32>
    %76 = arith.addf %70, %75 : vector<8x64xf32>
    %c2_75 = arith.constant 2 : index
    %c0_76 = arith.constant 0 : index
    %77 = vector.load %arg14[%c2_75, %c0_76] : memref<10x80xf32, #tpu.memory_space<vmem>>, vector<8x80xf32>
    %c0_77 = arith.constant 0 : index
    %c2_78 = arith.constant 2 : index
    %c0_79 = arith.constant 0 : index
    %c0_80 = arith.constant 0 : index
    %78 = vector.load %arg8[%c0_77, %c2_78, %c0_79, %c0_80] : memref<1x3x80x64xbf16, #tpu.memory_space<vmem>>, vector<1x1x80x64xbf16>
    %79 = vector.shape_cast %78 : vector<1x1x80x64xbf16> to vector<80x64xbf16>
    %80 = arith.truncf %77 : vector<8x80xf32> to vector<8x80xbf16>
    %cst_81 = arith.constant dense<0.000000e+00> : vector<8x64xf32>
    %81 = tpu.matmul %80, %79, %cst_81 {dimension_numbers = #tpu.dot_dimension_numbers<[1], [0], [0], [1], [0, 0, 1, 1], [], []>} : vector<8x80xbf16>, vector<80x64xbf16>, vector<8x64xf32> -> vector<8x64xf32>
    %82 = arith.addf %76, %81 : vector<8x64xf32>
    %cst_82 = arith.constant 0.000000e+00 : f32
    %83 = vector.broadcast %cst_82 : f32 to vector<8x64xf32>
    %84 = arith.maximumf %82, %83 : vector<8x64xf32>
    %c1_83 = arith.constant 1 : index
    %c8_84 = arith.constant 8 : index
    %85 = vector.load %arg14[%c1_83, %c8_84] : memref<10x80xf32, #tpu.memory_space<vmem>>, vector<8x64xf32>
    tpu.vector_store %arg14[%c1_83, %c8_84], %84 {strides = array<i32>} : memref<10x80xf32, #tpu.memory_space<vmem>>, vector<8x64xf32>,
    %c0_85 = arith.constant 0 : index
    %c0_86 = arith.constant 0 : index
    %c0_87 = arith.constant 0 : index
    %86 = vector.load %arg11[%c0_85, %c0_86, %c0_87] : memref<1x1x64xf32, #tpu.memory_space<vmem>>, vector<1x1x64xf32>
    %87 = vector.shape_cast %86 : vector<1x1x64xf32> to vector<1x64xf32>
    %c0_88 = arith.constant 0 : index
    %c0_89 = arith.constant 0 : index
    %88 = vector.load %arg14[%c0_88, %c0_89] : memref<10x80xf32, #tpu.memory_space<vmem>>, vector<8x80xf32>
    %c0_90 = arith.constant 0 : index
    %c0_91 = arith.constant 0 : index
    %c0_92 = arith.constant 0 : index
    %c0_93 = arith.constant 0 : index
    %89 = vector.load %arg10[%c0_90, %c0_91, %c0_92, %c0_93] : memref<1x3x80x64xbf16, #tpu.memory_space<vmem>>, vector<1x1x80x64xbf16>
    %90 = vector.shape_cast %89 : vector<1x1x80x64xbf16> to vector<80x64xbf16>
    %91 = arith.truncf %88 : vector<8x80xf32> to vector<8x80xbf16>
    %cst_94 = arith.constant dense<0.000000e+00> : vector<8x64xf32>
    %92 = tpu.matmul %91, %90, %cst_94 {dimension_numbers = #tpu.dot_dimension_numbers<[1], [0], [0], [1], [0, 0, 1, 1], [], []>} : vector<8x80xbf16>, vector<80x64xbf16>, vector<8x64xf32> -> vector<8x64xf32>
    %93 = vector.broadcast %87 : vector<1x64xf32> to vector<8x64xf32>
    %94 = arith.addf %93, %92 : vector<8x64xf32>
    %c1_95 = arith.constant 1 : index
    %c0_96 = arith.constant 0 : index
    %95 = vector.load %arg14[%c1_95, %c0_96] : memref<10x80xf32, #tpu.memory_space<vmem>>, vector<8x80xf32>
    %c0_97 = arith.constant 0 : index
    %c1_98 = arith.constant 1 : index
    %c0_99 = arith.constant 0 : index
    %c0_100 = arith.constant 0 : index
    %96 = vector.load %arg10[%c0_97, %c1_98, %c0_99, %c0_100] : memref<1x3x80x64xbf16, #tpu.memory_space<vmem>>, vector<1x1x80x64xbf16>
    %97 = vector.shape_cast %96 : vector<1x1x80x64xbf16> to vector<80x64xbf16>
    %98 = arith.truncf %95 : vector<8x80xf32> to vector<8x80xbf16>
    %cst_101 = arith.constant dense<0.000000e+00> : vector<8x64xf32>
    %99 = tpu.matmul %98, %97, %cst_101 {dimension_numbers = #tpu.dot_dimension_numbers<[1], [0], [0], [1], [0, 0, 1, 1], [], []>} : vector<8x80xbf16>, vector<80x64xbf16>, vector<8x64xf32> -> vector<8x64xf32>
    %100 = arith.addf %94, %99 : vector<8x64xf32>
    %c2_102 = arith.constant 2 : index
    %c0_103 = arith.constant 0 : index
    %101 = vector.load %arg14[%c2_102, %c0_103] : memref<10x80xf32, #tpu.memory_space<vmem>>, vector<8x80xf32>
    %c0_104 = arith.constant 0 : index
    %c2_105 = arith.constant 2 : index
    %c0_106 = arith.constant 0 : index
    %c0_107 = arith.constant 0 : index
    %102 = vector.load %arg10[%c0_104, %c2_105, %c0_106, %c0_107] : memref<1x3x80x64xbf16, #tpu.memory_space<vmem>>, vector<1x1x80x64xbf16>
    %103 = vector.shape_cast %102 : vector<1x1x80x64xbf16> to vector<80x64xbf16>
    %104 = arith.truncf %101 : vector<8x80xf32> to vector<8x80xbf16>
    %cst_108 = arith.constant dense<0.000000e+00> : vector<8x64xf32>
    %105 = tpu.matmul %104, %103, %cst_108 {dimension_numbers = #tpu.dot_dimension_numbers<[1], [0], [0], [1], [0, 0, 1, 1], [], []>} : vector<8x80xbf16>, vector<80x64xbf16>, vector<8x64xf32> -> vector<8x64xf32>
    %106 = arith.addf %100, %105 : vector<8x64xf32>
    %107 = arith.addf %106, %60 : vector<8x64xf32>
    %cst_109 = arith.constant 0.000000e+00 : f32
    %108 = vector.broadcast %cst_109 : f32 to vector<8x64xf32>
    %109 = arith.maximumf %107, %108 : vector<8x64xf32>
    %110 = arith.truncf %109 : vector<8x64xf32> to vector<8x64xbf16>
    %c0_110 = arith.constant 0 : index
    %c0_111 = arith.constant 0 : index
    %c0_112 = arith.constant 0 : index
    %111 = vector.load %arg12[%c0_110, %c0_111, %c0_112] : memref<1x8x64xbf16, #tpu.memory_space<vmem>>, vector<1x8x64xbf16>
    %112 = vector.shape_cast %111 : vector<1x8x64xbf16> to vector<8x64xbf16>
    %113 = vector.shape_cast %110 : vector<8x64xbf16> to vector<1x8x64xbf16>
    tpu.vector_store %arg12[%c0_110, %c0_111, %c0_112], %113 {strides = array<i32>} : memref<1x8x64xbf16, #tpu.memory_space<vmem>>, vector<1x8x64xbf16>,
    return
  }
  func.func @transform_0(%arg0: i32) -> (i32, i32, i32) {
    %c0_i32 = arith.constant 0 : i32
    %c0_i32_0 = arith.constant 0 : i32
    %c0_i32_1 = arith.constant 0 : i32
    return %arg0, %c0_i32, %c0_i32_0 : i32, i32, i32
  }
  func.func @transform_1(%arg0: i32) -> (i32, i32, i32) {
    %c0_i32 = arith.constant 0 : i32
    %c0_i32_0 = arith.constant 0 : i32
    %c0_i32_1 = arith.constant 0 : i32
    %c0_i32_2 = arith.constant 0 : i32
    return %c0_i32, %c0_i32_0, %c0_i32_1 : i32, i32, i32
  }
  func.func @transform_2(%arg0: i32) -> (i32, i32) {
    %c0_i32 = arith.constant 0 : i32
    %c0_i32_0 = arith.constant 0 : i32
    %c0_i32_1 = arith.constant 0 : i32
    return %c0_i32, %c0_i32_0 : i32, i32
  }
  func.func @transform_3(%arg0: i32) -> (i32, i32, i32) {
    %c0_i32 = arith.constant 0 : i32
    %c0_i32_0 = arith.constant 0 : i32
    %c0_i32_1 = arith.constant 0 : i32
    %c0_i32_2 = arith.constant 0 : i32
    return %c0_i32, %c0_i32_0, %c0_i32_1 : i32, i32, i32
  }
  func.func @transform_4(%arg0: i32) -> (i32, i32) {
    %c0_i32 = arith.constant 0 : i32
    %c0_i32_0 = arith.constant 0 : i32
    %c0_i32_1 = arith.constant 0 : i32
    return %c0_i32, %c0_i32_0 : i32, i32
  }
  func.func @transform_5(%arg0: i32) -> (i32, i32) {
    %c0_i32 = arith.constant 0 : i32
    %c0_i32_0 = arith.constant 0 : i32
    %c0_i32_1 = arith.constant 0 : i32
    return %c0_i32, %c0_i32_0 : i32, i32
  }
  func.func @transform_6(%arg0: i32) -> (i32, i32) {
    %c0_i32 = arith.constant 0 : i32
    %c0_i32_0 = arith.constant 0 : i32
    %c0_i32_1 = arith.constant 0 : i32
    return %c0_i32, %c0_i32_0 : i32, i32
  }
  func.func @transform_7(%arg0: i32) -> (i32, i32, i32, i32) {
    %c0_i32 = arith.constant 0 : i32
    %c0_i32_0 = arith.constant 0 : i32
    %c0_i32_1 = arith.constant 0 : i32
    %c0_i32_2 = arith.constant 0 : i32
    %c0_i32_3 = arith.constant 0 : i32
    return %c0_i32, %c0_i32_0, %c0_i32_1, %c0_i32_2 : i32, i32, i32, i32
  }
  func.func @transform_8(%arg0: i32) -> (i32, i32, i32) {
    %c0_i32 = arith.constant 0 : i32
    %c0_i32_0 = arith.constant 0 : i32
    %c0_i32_1 = arith.constant 0 : i32
    %c0_i32_2 = arith.constant 0 : i32
    return %c0_i32, %c0_i32_0, %c0_i32_1 : i32, i32, i32
  }
  func.func @transform_9(%arg0: i32) -> (i32, i32, i32, i32) {
    %c0_i32 = arith.constant 0 : i32
    %c0_i32_0 = arith.constant 0 : i32
    %c0_i32_1 = arith.constant 0 : i32
    %c0_i32_2 = arith.constant 0 : i32
    %c0_i32_3 = arith.constant 0 : i32
    return %c0_i32, %c0_i32_0, %c0_i32_1, %c0_i32_2 : i32, i32, i32, i32
  }
  func.func @transform_10(%arg0: i32) -> (i32, i32, i32) {
    %c0_i32 = arith.constant 0 : i32
    %c0_i32_0 = arith.constant 0 : i32
    %c0_i32_1 = arith.constant 0 : i32
    %c0_i32_2 = arith.constant 0 : i32
    return %c0_i32, %c0_i32_0, %c0_i32_1 : i32, i32, i32
  }
  func.func @transform_11(%arg0: i32) -> (i32, i32, i32) {
    %c0_i32 = arith.constant 0 : i32
    %c0_i32_0 = arith.constant 0 : i32
    %c0_i32_1 = arith.constant 0 : i32
    return %arg0, %c0_i32, %c0_i32_0 : i32, i32, i32
  }
}

</mosaic_0001>

<llo_original>
// kernel: tile.35
$region0: #{tile.35}
  %s0 = inlined_call_operand.vmem [shape: f32[8,8], index: 0, kind: input, shape index: {}]
  %s1 = inlined_call_operand.vmem [shape: f32[1,1,64], index: 1, kind: output, shape index: {}]
  $region1: #{tile.35} parent=0
    #allocation0 [shape = 'u8[4096]{0}', space=vmem, size = 0x1000, scoped, tag = 'scoped mem for output reshape']
    %v2 = vld [vmem:[%s0] sm:$0x1]
    %vm3 = vcmask 64512
    %4 = vst.msk [vmem:[#allocation0] sm:$0x1] %vm3, %v2
    %s5 = scalar_lea.vmem %s0, 7
    %v6 = vld [vmem:[%s5] sm:$0x1]
    %7 = vrot.lane.b32.xlu0 %v6, 56
    %v8 = vpop.permute.xlu0 %7
    %vm9 = vcmask 523712
    %10 = vst.msk [vmem:[#allocation0] sm:$0x1] %vm9, %v8
    %s11 = scalar_lea.vmem %s0, 6
    %v12 = vld [vmem:[%s11] sm:$0x1]
    %13 = vrot.lane.b32.xlu0 %v12, 48
    %v14 = vpop.permute.xlu0 %13
    %vm15 = vcmask 458112
    %16 = vst.msk [vmem:[#allocation0] sm:$0x1] %vm15, %v14
    %s17 = scalar_lea.vmem %s0, 5
    %v18 = vld [vmem:[%s17] sm:$0x1]
    %19 = vrot.lane.b32.xlu0 %v18, 40
    %v20 = vpop.permute.xlu0 %19
    %vm21 = vcmask 392512
    %22 = vst.msk [vmem:[#allocation0] sm:$0x1] %vm21, %v20
    %s23 = scalar_lea.vmem %s0, 4
    %v24 = vld [vmem:[%s23] sm:$0x1]
    %25 = vrot.lane.b32.xlu0 %v24, 32
    %v26 = vpop.permute.xlu0 %25
    %vm27 = vcmask 326912
    %28 = vst.msk [vmem:[#allocation0] sm:$0x1] %vm27, %v26
    %s29 = scalar_lea.vmem %s0, 3
    %v30 = vld [vmem:[%s29] sm:$0x1]
    %31 = vrot.lane.b32.xlu0 %v30, 24
    %v32 = vpop.permute.xlu0 %31
    %vm33 = vcmask 261312
    %34 = vst.msk [vmem:[#allocation0] sm:$0x1] %vm33, %v32
    %s35 = scalar_lea.vmem %s0, 2
    %v36 = vld [vmem:[%s35] sm:$0x1]
    %37 = vrot.lane.b32.xlu0 %v36, 16
    %v38 = vpop.permute.xlu0 %37
    %vm39 = vcmask 195712
    %40 = vst.msk [vmem:[#allocation0] sm:$0x1] %vm39, %v38
    %s41 = scalar_lea.vmem %s0, 1
    %v42 = vld [vmem:[%s41] sm:$0x1]
    %43 = vrot.lane.b32.xlu0 %v42, 8
    %v44 = vpop.permute.xlu0 %43
    %vm45 = vcmask 130112
    %46 = vst.msk [vmem:[#allocation0] sm:$0x1] %vm45, %v44
    %s48 = ssub.s32 2, 1
    %v49 = vld [vmem:[#allocation0] sm:%s48]
    %s51 = ssub.s32 2, 1
    %52 = vst [vmem:[%s1] sm:%s51] %v49

// kernel: tile.23
$region0: #{tile.23}
  %s0 = inlined_call_operand.vmem [shape: f32[8,8], index: 0, kind: input, shape index: {}]
  %s1 = inlined_call_operand.vmem [shape: f32[1,64], index: 1, kind: output, shape index: {}]
  $region1: #{tile.23} parent=0
    #allocation0 [shape = 'u8[4096]{0}', space=vmem, size = 0x1000, scoped, tag = 'scoped mem for output reshape']
    %v2 = vld [vmem:[%s0] sm:$0x1]
    %vm3 = vcmask 64512
    %4 = vst.msk [vmem:[#allocation0] sm:$0x1] %vm3, %v2
    %s5 = scalar_lea.vmem %s0, 7
    %v6 = vld [vmem:[%s5] sm:$0x1]
    %7 = vrot.lane.b32.xlu0 %v6, 56
    %v8 = vpop.permute.xlu0 %7
    %vm9 = vcmask 523712
    %10 = vst.msk [vmem:[#allocation0] sm:$0x1] %vm9, %v8
    %s11 = scalar_lea.vmem %s0, 6
    %v12 = vld [vmem:[%s11] sm:$0x1]
    %13 = vrot.lane.b32.xlu0 %v12, 48
    %v14 = vpop.permute.xlu0 %13
    %vm15 = vcmask 458112
    %16 = vst.msk [vmem:[#allocation0] sm:$0x1] %vm15, %v14
    %s17 = scalar_lea.vmem %s0, 5
    %v18 = vld [vmem:[%s17] sm:$0x1]
    %19 = vrot.lane.b32.xlu0 %v18, 40
    %v20 = vpop.permute.xlu0 %19
    %vm21 = vcmask 392512
    %22 = vst.msk [vmem:[#allocation0] sm:$0x1] %vm21, %v20
    %s23 = scalar_lea.vmem %s0, 4
    %v24 = vld [vmem:[%s23] sm:$0x1]
    %25 = vrot.lane.b32.xlu0 %v24, 32
    %v26 = vpop.permute.xlu0 %25
    %vm27 = vcmask 326912
    %28 = vst.msk [vmem:[#allocation0] sm:$0x1] %vm27, %v26
    %s29 = scalar_lea.vmem %s0, 3
    %v30 = vld [vmem:[%s29] sm:$0x1]
    %31 = vrot.lane.b32.xlu0 %v30, 24
    %v32 = vpop.permute.xlu0 %31
    %vm33 = vcmask 261312
    %34 = vst.msk [vmem:[#allocation0] sm:$0x1] %vm33, %v32
    %s35 = scalar_lea.vmem %s0, 2
    %v36 = vld [vmem:[%s35] sm:$0x1]
    %37 = vrot.lane.b32.xlu0 %v36, 16
    %v38 = vpop.permute.xlu0 %37
    %vm39 = vcmask 195712
    %40 = vst.msk [vmem:[#allocation0] sm:$0x1] %vm39, %v38
    %s41 = scalar_lea.vmem %s0, 1
    %v42 = vld [vmem:[%s41] sm:$0x1]
    %43 = vrot.lane.b32.xlu0 %v42, 8
    %v44 = vpop.permute.xlu0 %43
    %vm45 = vcmask 130112
    %46 = vst.msk [vmem:[#allocation0] sm:$0x1] %vm45, %v44
    %s48 = ssub.s32 2, 1
    %v49 = vld [vmem:[#allocation0] sm:%s48]
    %s51 = ssub.s32 2, 1
    %52 = vst [vmem:[%s1] sm:%s51] %v49

// kernel: tile.22
$region0: #{tile.22}
  #allocation0 [shape = 's32[1]{0}', space=sflag, size = 0x4, scoped, tag = 'scoped memory for tile.22']
  %s0 = inlined_call_operand.vmem [shape: f32[8], index: 0, kind: input, shape index: {}]
  %s1 = inlined_call_operand.vmem [shape: f32[8,8], index: 1, kind: output, shape index: {}]
  // Predicated region
  $region2: #{tile.22} parent=0 // pred_check
    _
  $region3: #{tile.22} parent=0 // pred_check_branch
    %3 = sbr.rel (0) target = $region5
  $region4: #{tile.22} parent=0 // pred_region
    _
  $region5: #{tile.22} parent=0 // pred_fallthru
    _
  %v4 = vld [vmem:[%s0] ss:$0 sm:$0xff]
  %5 = vst [vmem:[%s1] sm:$0xff] %v4

// kernel: _lambda_.1
$region0: #{_lambda_.1}
  #allocation0 [shape = 'u32[]', space=smem, size = 0x4, offset = 0x4, fixed_abs, tag = 'smem constant byte address 0x4 - core index']
  #allocation1 [shape = 'u32[72,128]{1,0:T(1,128)}', space=vmem, size = 0x9000, scoped, tag = 'internal scratch']
  #allocation2 [shape = 'f32[18,72]{1,0:T(8,128)}', space=vmem, size = 0x3000, scoped, tag = 'scratch operand']
  #allocation3 [shape = 'f32[10,80]{1,0:T(8,128)}', space=vmem, size = 0x2000, scoped, tag = 'scratch operand']
  %s0 = inlined_call_operand.vmem [shape: bf16[2,16,64], index: 0, kind: input, shape index: {}]
  %s1 = inlined_call_operand.hbm [shape: bf16[3,72,64], index: 1, kind: input, shape index: {}]
  %s2 = inlined_call_operand.vmem [shape: f32[1,64], index: 2, kind: input, shape index: {}]
  %s3 = inlined_call_operand.vmem [shape: bf16[3,80,64], index: 3, kind: input, shape index: {}]
  %s4 = inlined_call_operand.vmem [shape: f32[1,64], index: 4, kind: input, shape index: {}]
  %s5 = inlined_call_operand.vmem [shape: bf16[72,64], index: 5, kind: input, shape index: {}]
  %s6 = inlined_call_operand.vmem [shape: f32[1,64], index: 6, kind: input, shape index: {}]
  %s7 = inlined_call_operand.vmem [shape: bf16[1,3,80,64], index: 7, kind: input, shape index: {}]
  %s8 = inlined_call_operand.vmem [shape: f32[1,1,64], index: 8, kind: input, shape index: {}]
  %s9 = inlined_call_operand.vmem [shape: bf16[1,3,80,64], index: 9, kind: input, shape index: {}]
  %s10 = inlined_call_operand.vmem [shape: f32[1,1,64], index: 10, kind: input, shape index: {}]
  %s11 = inlined_call_operand.vmem [shape: bf16[2,8,64], index: 11, kind: output, shape index: {}]
  %s12 = sld [smem:[#allocation0]]
  $region81: #{_lambda_.1} parent=0
    _
  %s14 = ssub.s32 1, %s12
  %s15 = scalar_select 0, %s14, %s12
  $region1: #{_lambda_.1} parent=0
    #allocation4 [shape = 'u8[55296]{0}', space=vmem, size = 0xd800, scoped, tag = 'input window, operand 1, single buffered']
    #allocation5 [shape = 's32[2]{0}', space=sflag, size = 0x8, scoped, tag = 'scoped memory for _lambda_.1']
    %16 = vsyncpa [#allocation5], 0
    loop: start=0, step=1, limit=4
    $region2: #{_lambda_.1} parent=1 // loop_pre_header
      _
    $region3: #{_lambda_.1} parent=1 // loop_header
      %s18 = sphi 0, %s22
      %p19 = scmp.ge.s32.totalorder %s18, 4
      %s28 = sphi 0, %s30
      %s31 = sphi 0, %s28
      %s32 = sphi 0, %s31
      %s48 = sphi 0, %s32
      %s52 = sphi 0, %s52
      %s54 = sphi 0, %s52
      %s55 = sphi 0, %s54
      %s69 = sphi 0, %s55
      %s73 = sphi 0, %s73
      %s75 = sphi 0, %s73
      %s76 = sphi 0, %s75
      %s90 = sphi 0, %s76
      %s94 = sphi 0, %s94
      %s96 = sphi 0, %s94
      %s97 = sphi 0, %s96
      %s111 = sphi 0, %s97
      %s115 = sphi 0, %s115
      %s117 = sphi 0, %s115
      %s118 = sphi 0, %s117
      %s132 = sphi 0, %s118
      %s136 = sphi 0, %s136
      %s138 = sphi 0, %s136
      %s139 = sphi 0, %s138
      %s153 = sphi 0, %s139
      %s157 = sphi 0, %s157
      %s159 = sphi 0, %s157
      %s160 = sphi 0, %s159
      %s174 = sphi 0, %s160
      %s178 = sphi 0, %s178
      %s180 = sphi 0, %s178
      %s181 = sphi 0, %s180
      %s195 = sphi 0, %s181
      %s199 = sphi 0, %s199
      %s201 = sphi 0, %s199
      %s202 = sphi 0, %s201
      %s216 = sphi 0, %s202
      %s220 = sphi 0, %s220
      %s222 = sphi 0, %s220
      %s223 = sphi 0, %s222
      %s237 = sphi 0, %s223
      %s241 = sphi 0, %s241
      %s243 = sphi 0, %s241
      %s244 = sphi 0, %s243
      %s258 = sphi 0, %s244
      %s264 = sphi 0, %s266
      %s267 = sphi 0, %s264
      %s268 = sphi 0, %s267
      %s284 = sphi 0, %s268
    $region4: #{_lambda_.1} parent=1 // loop_header_branch
      %21 = sbr.rel (%p19) target = $region8
    $region5: #{_lambda_.1} parent=1 // loop_body
      %s23 = ssub.s32 %s18, 1
      %s24 = ssub.s32 %s18, 2
      %s25 = sadd.s32 %s18, 1
      %s26 = ssub.s32 %s18, %s25
      %p27 = scmp.eq.s32.totalorder %s26, 0
      %s29 = sadd.s32 %s28, 1
      %s30 = scalar_select %p27, %s28, %s29
      %p33 = pneg %p27
      %p34 = scmp.eq.s32.totalorder %s18, 1
      %p35 = por %p33, %p34
      %p36 = scmp.ne.s32.totalorder %s28, %s31
      %p37 = scmp.eq.s32.totalorder %s18, 0
      %p38 = por %p36, %p37
      %p39 = scmp.ne.s32.totalorder %s28, %s31
      %p40 = scmp.eq.s32.totalorder %s23, 1
      %p41 = por %p39, %p40
      %p42 = scmp.ne.s32.totalorder %s31, %s32
      %p43 = scmp.eq.s32.totalorder %s23, 0
      %p44 = por %p42, %p43
      %p45 = scmp.ne.s32.totalorder %s31, %s32
      %p46 = scmp.eq.s32.totalorder %s24, 1
      %p47 = por %p45, %p46
      %p49 = scmp.ne.s32.totalorder %s32, %s48
      %p50 = scmp.eq.s32.totalorder %s24, 0
      %p51 = por %p49, %p50
      %s53 = sadd.s32 %s52, 1
      %p56 = scmp.eq.s32.totalorder %s18, 1
      %p57 = scmp.ne.s32.totalorder %s52, %s54
      %p58 = scmp.eq.s32.totalorder %s18, 0
      %p59 = por %p57, %p58
      %p60 = scmp.ne.s32.totalorder %s52, %s54
      %p61 = scmp.eq.s32.totalorder %s23, 1
      %p62 = por %p60, %p61
      %p63 = scmp.ne.s32.totalorder %s54, %s55
      %p64 = scmp.eq.s32.totalorder %s23, 0
      %p65 = por %p63, %p64
      %p66 = scmp.ne.s32.totalorder %s54, %s55
      %p67 = scmp.eq.s32.totalorder %s24, 1
      %p68 = por %p66, %p67
      %p70 = scmp.ne.s32.totalorder %s55, %s69
      %p71 = scmp.eq.s32.totalorder %s24, 0
      %p72 = por %p70, %p71
      %s74 = sadd.s32 %s73, 1
      %p77 = scmp.eq.s32.totalorder %s18, 1
      %p78 = scmp.ne.s32.totalorder %s73, %s75
      %p79 = scmp.eq.s32.totalorder %s18, 0
      %p80 = por %p78, %p79
      %p81 = scmp.ne.s32.totalorder %s73, %s75
      %p82 = scmp.eq.s32.totalorder %s23, 1
      %p83 = por %p81, %p82
      %p84 = scmp.ne.s32.totalorder %s75, %s76
      %p85 = scmp.eq.s32.totalorder %s23, 0
      %p86 = por %p84, %p85
      %p87 = scmp.ne.s32.totalorder %s75, %s76
      %p88 = scmp.eq.s32.totalorder %s24, 1
      %p89 = por %p87, %p88
      %p91 = scmp.ne.s32.totalorder %s76, %s90
      %p92 = scmp.eq.s32.totalorder %s24, 0
      %p93 = por %p91, %p92
      %s95 = sadd.s32 %s94, 1
      %p98 = scmp.eq.s32.totalorder %s18, 1
      %p99 = scmp.ne.s32.totalorder %s94, %s96
      %p100 = scmp.eq.s32.totalorder %s18, 0
      %p101 = por %p99, %p100
      %p102 = scmp.ne.s32.totalorder %s94, %s96
      %p103 = scmp.eq.s32.totalorder %s23, 1
      %p104 = por %p102, %p103
      %p105 = scmp.ne.s32.totalorder %s96, %s97
      %p106 = scmp.eq.s32.totalorder %s23, 0
      %p107 = por %p105, %p106
      %p108 = scmp.ne.s32.totalorder %s96, %s97
      %p109 = scmp.eq.s32.totalorder %s24, 1
      %p110 = por %p108, %p109
      %p112 = scmp.ne.s32.totalorder %s97, %s111
      %p113 = scmp.eq.s32.totalorder %s24, 0
      %p114 = por %p112, %p113
      %s116 = sadd.s32 %s115, 1
      %p119 = scmp.eq.s32.totalorder %s18, 1
      %p120 = scmp.ne.s32.totalorder %s115, %s117
      %p121 = scmp.eq.s32.totalorder %s18, 0
      %p122 = por %p120, %p121
      %p123 = scmp.ne.s32.totalorder %s115, %s117
      %p124 = scmp.eq.s32.totalorder %s23, 1
      %p125 = por %p123, %p124
      %p126 = scmp.ne.s32.totalorder %s117, %s118
      %p127 = scmp.eq.s32.totalorder %s23, 0
      %p128 = por %p126, %p127
      %p129 = scmp.ne.s32.totalorder %s117, %s118
      %p130 = scmp.eq.s32.totalorder %s24, 1
      %p131 = por %p129, %p130
      %p133 = scmp.ne.s32.totalorder %s118, %s132
      %p134 = scmp.eq.s32.totalorder %s24, 0
      %p135 = por %p133, %p134
      %s137 = sadd.s32 %s136, 1
      %p140 = scmp.eq.s32.totalorder %s18, 1
      %p141 = scmp.ne.s32.totalorder %s136, %s138
      %p142 = scmp.eq.s32.totalorder %s18, 0
      %p143 = por %p141, %p142
      %p144 = scmp.ne.s32.totalorder %s136, %s138
      %p145 = scmp.eq.s32.totalorder %s23, 1
      %p146 = por %p144, %p145
      %p147 = scmp.ne.s32.totalorder %s138, %s139
      %p148 = scmp.eq.s32.totalorder %s23, 0
      %p149 = por %p147, %p148
      %p150 = scmp.ne.s32.totalorder %s138, %s139
      %p151 = scmp.eq.s32.totalorder %s24, 1
      %p152 = por %p150, %p151
      %p154 = scmp.ne.s32.totalorder %s139, %s153
      %p155 = scmp.eq.s32.totalorder %s24, 0
      %p156 = por %p154, %p155
      %s158 = sadd.s32 %s157, 1
      %p161 = scmp.eq.s32.totalorder %s18, 1
      %p162 = scmp.ne.s32.totalorder %s157, %s159
      %p163 = scmp.eq.s32.totalorder %s18, 0
      %p164 = por %p162, %p163
      %p165 = scmp.ne.s32.totalorder %s157, %s159
      %p166 = scmp.eq.s32.totalorder %s23, 1
      %p167 = por %p165, %p166
      %p168 = scmp.ne.s32.totalorder %s159, %s160
      %p169 = scmp.eq.s32.totalorder %s23, 0
      %p170 = por %p168, %p169
      %p171 = scmp.ne.s32.totalorder %s159, %s160
      %p172 = scmp.eq.s32.totalorder %s24, 1
      %p173 = por %p171, %p172
      %p175 = scmp.ne.s32.totalorder %s160, %s174
      %p176 = scmp.eq.s32.totalorder %s24, 0
      %p177 = por %p175, %p176
      %s179 = sadd.s32 %s178, 1
      %p182 = scmp.eq.s32.totalorder %s18, 1
      %p183 = scmp.ne.s32.totalorder %s178, %s180
      %p184 = scmp.eq.s32.totalorder %s18, 0
      %p185 = por %p183, %p184
      %p186 = scmp.ne.s32.totalorder %s178, %s180
      %p187 = scmp.eq.s32.totalorder %s23, 1
      %p188 = por %p186, %p187
      %p189 = scmp.ne.s32.totalorder %s180, %s181
      %p190 = scmp.eq.s32.totalorder %s23, 0
      %p191 = por %p189, %p190
      %p192 = scmp.ne.s32.totalorder %s180, %s181
      %p193 = scmp.eq.s32.totalorder %s24, 1
      %p194 = por %p192, %p193
      %p196 = scmp.ne.s32.totalorder %s181, %s195
      %p197 = scmp.eq.s32.totalorder %s24, 0
      %p198 = por %p196, %p197
      %s200 = sadd.s32 %s199, 1
      %p203 = scmp.eq.s32.totalorder %s18, 1
      %p204 = scmp.ne.s32.totalorder %s199, %s201
      %p205 = scmp.eq.s32.totalorder %s18, 0
      %p206 = por %p204, %p205
      %p207 = scmp.ne.s32.totalorder %s199, %s201
      %p208 = scmp.eq.s32.totalorder %s23, 1
      %p209 = por %p207, %p208
      %p210 = scmp.ne.s32.totalorder %s201, %s202
      %p211 = scmp.eq.s32.totalorder %s23, 0
      %p212 = por %p210, %p211
      %p213 = scmp.ne.s32.totalorder %s201, %s202
      %p214 = scmp.eq.s32.totalorder %s24, 1
      %p215 = por %p213, %p214
      %p217 = scmp.ne.s32.totalorder %s202, %s216
      %p218 = scmp.eq.s32.totalorder %s24, 0
      %p219 = por %p217, %p218
      %s221 = sadd.s32 %s220, 1
      %p224 = scmp.eq.s32.totalorder %s18, 1
      %p225 = scmp.ne.s32.totalorder %s220, %s222
      %p226 = scmp.eq.s32.totalorder %s18, 0
      %p227 = por %p225, %p226
      %p228 = scmp.ne.s32.totalorder %s220, %s222
      %p229 = scmp.eq.s32.totalorder %s23, 1
      %p230 = por %p228, %p229
      %p231 = scmp.ne.s32.totalorder %s222, %s223
      %p232 = scmp.eq.s32.totalorder %s23, 0
      %p233 = por %p231, %p232
      %p234 = scmp.ne.s32.totalorder %s222, %s223
      %p235 = scmp.eq.s32.totalorder %s24, 1
      %p236 = por %p234, %p235
      %p238 = scmp.ne.s32.totalorder %s223, %s237
      %p239 = scmp.eq.s32.totalorder %s24, 0
      %p240 = por %p238, %p239
      %s242 = sadd.s32 %s241, 1
      %p245 = scmp.eq.s32.totalorder %s18, 1
      %p246 = scmp.ne.s32.totalorder %s241, %s243
      %p247 = scmp.eq.s32.totalorder %s18, 0
      %p248 = por %p246, %p247
      %p249 = scmp.ne.s32.totalorder %s241, %s243
      %p250 = scmp.eq.s32.totalorder %s23, 1
      %p251 = por %p249, %p250
      %p252 = scmp.ne.s32.totalorder %s243, %s244
      %p253 = scmp.eq.s32.totalorder %s23, 0
      %p254 = por %p252, %p253
      %p255 = scmp.ne.s32.totalorder %s243, %s244
      %p256 = scmp.eq.s32.totalorder %s24, 1
      %p257 = por %p255, %p256
      %p259 = scmp.ne.s32.totalorder %s244, %s258
      %p260 = scmp.eq.s32.totalorder %s24, 0
      %p261 = por %p259, %p260
      %s262 = ssub.s32 %s18, %s25
      %p263 = scmp.eq.s32.totalorder %s262, 0
      %s265 = sadd.s32 %s264, 1
      %s266 = scalar_select %p263, %s264, %s265
      %p269 = pneg %p263
      %p270 = scmp.eq.s32.totalorder %s18, 1
      %p271 = por %p269, %p270
      %p272 = scmp.ne.s32.totalorder %s264, %s267
      %p273 = scmp.eq.s32.totalorder %s18, 0
      %p274 = por %p272, %p273
      %p275 = scmp.ne.s32.totalorder %s264, %s267
      %p276 = scmp.eq.s32.totalorder %s23, 1
      %p277 = por %p275, %p276
      %p278 = scmp.ne.s32.totalorder %s267, %s268
      %p279 = scmp.eq.s32.totalorder %s23, 0
      %p280 = por %p278, %p279
      %p281 = scmp.ne.s32.totalorder %s267, %s268
      %p282 = scmp.eq.s32.totalorder %s24, 1
      %p283 = por %p281, %p282
      %p285 = scmp.ne.s32.totalorder %s268, %s284
      %p286 = scmp.eq.s32.totalorder %s24, 0
      %p287 = por %p285, %p286
      %p288 = scmp.le.s32.totalorder 1, %s18
      %p289 = scmp.lt.s32.totalorder %s18, 3
      %p290 = pnand %p288, %p289
      %p291 = pneg %p290
      // Predicated region
      $region9: #{_lambda_.1} parent=5 // pred_check
        _
      $region10: #{_lambda_.1} parent=5 // pred_check_branch
        %293 = sbr.rel (%p290) target = $region12
      $region11: #{_lambda_.1} parent=5 // pred_region
        %s294 = ssub.s32 %s18, 1
        // Predicated region
        $region13: #{_lambda_.1} parent=11 // pred_check
          %p295 = pneg %p65
        $region14: #{_lambda_.1} parent=11 // pred_check_branch
          %297 = sbr.rel (%p295) target = $region16
        $region15: #{_lambda_.1} parent=11 // pred_region
          %299 = vsyncadd [#allocation5], 0
          %s300 = sshll.u32 %s1, 4
          %s301 = int_to_ptr.hbm [resolvable:$true] %s300
          %s302 = sshll.u32 [#allocation4], 4
          %s303 = int_to_ptr.vmem [resolvable:$true] %s302
          %308 = dma.hbm_to_vmem [thread:$0]  %s301, 1728, %s303, [#allocation5], 64, 64, 4
        $region16: #{_lambda_.1} parent=11 // pred_fallthru
          _
        // Predicated region
        $region17: #{_lambda_.1} parent=11 // pred_check
          %p309 = pneg %p86
        $region18: #{_lambda_.1} parent=11 // pred_check_branch
          %311 = sbr.rel (%p309) target = $region20
        $region19: #{_lambda_.1} parent=11 // pred_region
          _
        $region20: #{_lambda_.1} parent=11 // pred_fallthru
          _
        // Predicated region
        $region21: #{_lambda_.1} parent=11 // pred_check
          %p312 = pneg %p107
        $region22: #{_lambda_.1} parent=11 // pred_check_branch
          %314 = sbr.rel (%p312) target = $region24
        $region23: #{_lambda_.1} parent=11 // pred_region
          _
        $region24: #{_lambda_.1} parent=11 // pred_fallthru
          _
        // Predicated region
        $region25: #{_lambda_.1} parent=11 // pred_check
          %p315 = pneg %p128
        $region26: #{_lambda_.1} parent=11 // pred_check_branch
          %317 = sbr.rel (%p315) target = $region28
        $region27: #{_lambda_.1} parent=11 // pred_region
          _
        $region28: #{_lambda_.1} parent=11 // pred_fallthru
          _
        // Predicated region
        $region29: #{_lambda_.1} parent=11 // pred_check
          %p318 = pneg %p149
        $region30: #{_lambda_.1} parent=11 // pred_check_branch
          %320 = sbr.rel (%p318) target = $region32
        $region31: #{_lambda_.1} parent=11 // pred_region
          _
        $region32: #{_lambda_.1} parent=11 // pred_fallthru
          _
        // Predicated region
        $region33: #{_lambda_.1} parent=11 // pred_check
          %p321 = pneg %p170
        $region34: #{_lambda_.1} parent=11 // pred_check_branch
          %323 = sbr.rel (%p321) target = $region36
        $region35: #{_lambda_.1} parent=11 // pred_region
          _
        $region36: #{_lambda_.1} parent=11 // pred_fallthru
          _
        // Predicated region
        $region37: #{_lambda_.1} parent=11 // pred_check
          %p324 = pneg %p191
        $region38: #{_lambda_.1} parent=11 // pred_check_branch
          %326 = sbr.rel (%p324) target = $region40
        $region39: #{_lambda_.1} parent=11 // pred_region
          _
        $region40: #{_lambda_.1} parent=11 // pred_fallthru
          _
        // Predicated region
        $region41: #{_lambda_.1} parent=11 // pred_check
          %p327 = pneg %p212
        $region42: #{_lambda_.1} parent=11 // pred_check_branch
          %329 = sbr.rel (%p327) target = $region44
        $region43: #{_lambda_.1} parent=11 // pred_region
          _
        $region44: #{_lambda_.1} parent=11 // pred_fallthru
          _
        // Predicated region
        $region45: #{_lambda_.1} parent=11 // pred_check
          %p330 = pneg %p233
        $region46: #{_lambda_.1} parent=11 // pred_check_branch
          %332 = sbr.rel (%p330) target = $region48
        $region47: #{_lambda_.1} parent=11 // pred_region
          _
        $region48: #{_lambda_.1} parent=11 // pred_fallthru
          _
        // Predicated region
        $region49: #{_lambda_.1} parent=11 // pred_check
          %p333 = pneg %p254
        $region50: #{_lambda_.1} parent=11 // pred_check_branch
          %335 = sbr.rel (%p333) target = $region52
        $region51: #{_lambda_.1} parent=11 // pred_region
          _
        $region52: #{_lambda_.1} parent=11 // pred_fallthru
          _
      $region12: #{_lambda_.1} parent=5 // pred_fallthru
        _
      %p336 = scmp.lt.s32.totalorder %s18, 2
      // Predicated region
      $region53: #{_lambda_.1} parent=5 // pred_check
        %p337 = pneg %p336
      $region54: #{_lambda_.1} parent=5 // pred_check_branch
        %339 = sbr.rel (%p337) target = $region56
      $region55: #{_lambda_.1} parent=5 // pred_region
        // Predicated region
        $region57: #{_lambda_.1} parent=55 // pred_check
          %p340 = pneg %p38
        $region58: #{_lambda_.1} parent=55 // pred_check_branch
          %342 = sbr.rel (%p340) target = $region60
        $region59: #{_lambda_.1} parent=55 // pred_region
          %p343 = scmp.lt.s32.totalorder %s18, 1
          %s344 = scalar_select %p343, %s18, 1
          %s345 = smul.addr %s344, 2
          %s346 = smul.addr %s345, 4
          %s347 = scalar_lea.vmem %s0, %s346
        $region60: #{_lambda_.1} parent=55 // pred_fallthru
          _
      $region56: #{_lambda_.1} parent=5 // pred_fallthru
        _
      %p348 = scmp.le.s32.totalorder 1, %s18
      %p349 = scmp.lt.s32.totalorder %s18, 3
      %p350 = pnand %p348, %p349
      %p351 = pneg %p350
      // Predicated region
      $region61: #{_lambda_.1} parent=5 // pred_check
        _
      $region62: #{_lambda_.1} parent=5 // pred_check_branch
        %353 = sbr.rel (%p350) target = $region64
      $region63: #{_lambda_.1} parent=5 // pred_region
        %s354 = ssub.s32 %s18, 1
        // Predicated region
        $region65: #{_lambda_.1} parent=63 // pred_check
          %p355 = pneg %p65
        $region66: #{_lambda_.1} parent=63 // pred_check_branch
          %357 = sbr.rel (%p355) target = $region68
        $region67: #{_lambda_.1} parent=63 // pred_region
          %359 = dma.done [#allocation5], 1728
        $region68: #{_lambda_.1} parent=63 // pred_fallthru
          _
        %p360 = scmp.lt.s32.totalorder %s23, 1
        %s361 = scalar_select %p360, %s23, 1
        %s362 = smul.addr %s361, 2
        %s363 = smul.addr %s362, 4
        %s364 = scalar_lea.vmem %s0, %s363
        %p365 = pneg %p44
        %p366 = pneg %p41
        %p367 = pneg %p65
        %p368 = pneg %p62
        %p369 = pneg %p86
        %p370 = pneg %p83
        %p371 = pneg %p107
        %p372 = pneg %p104
        %p373 = pneg %p128
        %p374 = pneg %p125
        %p375 = pneg %p149
        %p376 = pneg %p146
        %p377 = pneg %p170
        %p378 = pneg %p167
        %p379 = pneg %p191
        %p380 = pneg %p188
        %p381 = pneg %p212
        %p382 = pneg %p209
        %p383 = pneg %p233
        %p384 = pneg %p230
        %p385 = pneg %p254
        %p386 = pneg %p251
        %p387 = pneg %p280
        %p388 = pneg %p277
        %p389 = scmp.lt.s32.totalorder %s23, 1
        %s390 = scalar_select %p389, %s23, 1
        %s391 = smul.addr %s390, 4
        %s392 = scalar_lea.vmem %s11, %s391
        %p393 = scmp.lt.s32.totalorder %s23, 1
        %s394 = scalar_select %p393, %s23, 1
        %s395 = smul.addr %s394, 2
        %s396 = smul.addr %s395, 4
        %s397 = scalar_lea.vmem %s0, %s396
        %p398 = scmp.lt.s32.totalorder %s23, 1
        %s399 = scalar_select %p398, %s23, 1
        %s400 = smul.addr %s399, 4
        %s401 = scalar_lea.vmem %s11, %s400
        %vm403 = vcmask 588800
        %404 = vst.msk [vmem:[#allocation2] sm:$0xff] %vm403, 0.0
        %405 = vst.msk [vmem:[#allocation2 + $0x8] sm:$0xff] %vm403, 0.0
        %vm406 = vcmask 582656
        %407 = vst.msk [vmem:[#allocation2 + $0x10] sm:$0x3] %vm406, 0.0
        %vm408 = vcmask 654336
        %409 = vst.msk [vmem:[#allocation3] sm:$0xff] %vm408, 0.0
        %vm410 = vcmask 648192
        %411 = vst.msk [vmem:[#allocation3 + $0x8] sm:$0x3] %vm410, 0.0
        %v412 = vld [vmem:[%s397] sm:$0xf]
        %v413 = vld [vmem:[%s397 + $0x4] sm:$0xf]
        %v414 = vunpack.c.l.bf16 %v412
        %v415 = vunpack.c.l.bf16 %v413
        %418 = vrot.lane.b32.xlu0 %v414, 4
        %v419 = vpop.permute.xlu0 %418
        %420 = vrot.lane.b32.xlu0 %v415, 4
        %v421 = vpop.permute.xlu0 %420
        %vm424 = vcmask 556064
        %425 = vst.msk [vmem:[#allocation2 + $0x1] sm:$0xff] %vm424, %v419
        %426 = vst.msk [vmem:[#allocation2 + $0x9] sm:$0xff] %vm424, %v421
        %v427 = vld [vmem:[%s2] sm:$0x1]
        %v428 = vld [vmem:[#allocation2] ss:$2 sm:$0xff]
        %v429 = vld [vmem:[#allocation4] sm:$0xf]
        %v430 = vld [vmem:[#allocation4 + $0x4] sm:$0xf]
        %v431 = vld [vmem:[#allocation4 + $0x8] sm:$0xf]
        %v432 = vld [vmem:[#allocation4 + $0xc] sm:$0xf]
        %v433 = vld [vmem:[#allocation4 + $0x10] sm:$0xf]
        %v434 = vld [vmem:[#allocation4 + $0x14] sm:$0xf]
        %v435 = vld [vmem:[#allocation4 + $0x18] sm:$0xf]
        %v436 = vld [vmem:[#allocation4 + $0x1c] sm:$0xf]
        %v437 = vld [vmem:[#allocation4 + $0x20] sm:$0xf]
        %v438 = vpack.c.bf16 %v428, %v428
        %v448 = vunpack.c.l.b16 %v429
        %v449 = vunpack.c.l.b16 %v430
        %v450 = vunpack.c.l.b16 %v431
        %v451 = vunpack.c.l.b16 %v432
        %v452 = vunpack.c.l.b16 %v433
        %v453 = vunpack.c.l.b16 %v434
        %v454 = vunpack.c.l.b16 %v435
        %v455 = vunpack.c.l.b16 %v436
        %v456 = vunpack.c.l.b16 %v437
        %v457 = vpack.c.b16 %v449, %v448
        %v458 = vpack.c.b16 %v451, %v450
        %v459 = vpack.c.b16 %v453, %v452
        %v460 = vpack.c.b16 %v455, %v454
        %v461 = vpack.c.b16 %v456, %v456
        %v467 = vsel %vm403, %v438, 0
        %vm469 = vcmask 1043456
        %v471 = vsel %vm469, %v461, 0
        %473 = vmatpush.bf16.msra.mxu0 0
        %474 = vmatpush.bf16.msra.mxu0 0
        %475 = vmatpush.bf16.msra.mxu0 0
        %476 = vmatpush.bf16.msra.mxu0 %v471
        %477 = vmatpush.bf16.msra.mxu0 %v460
        %478 = vmatpush.bf16.msra.mxu0 %v459
        %479 = vmatpush.bf16.msra.mxu0 %v458
        %480 = vmatpush.bf16.msra.mxu0 %v457
        %481 = vmatmul.bf16.gmra.mxu0 %v467
        %v482 = vpop.f32.mrf.mxu0
        %v483 = vadd.f32 0.0, %v482
        %v484 = vpop.f32.mrf.mxu0
        %485 = vdwg.mxu0
        %v487 = vperm.slane %v427, 0
        %v489 = vadd.f32 %v487, %v483
        %s490 = scalar_lea.vmem [#allocation2], 1
        %v491 = vld [vmem:[%s490] ss:$2 sm:$0xff]
        %s492 = scalar_lea.vmem [#allocation4], 36
        %v493 = vld [vmem:[%s492] sm:$0xf]
        %v494 = vld [vmem:[%s492 + $0x4] sm:$0xf]
        %v495 = vld [vmem:[%s492 + $0x8] sm:$0xf]
        %v496 = vld [vmem:[%s492 + $0xc] sm:$0xf]
        %v497 = vld [vmem:[%s492 + $0x10] sm:$0xf]
        %v498 = vld [vmem:[%s492 + $0x14] sm:$0xf]
        %v499 = vld [vmem:[%s492 + $0x18] sm:$0xf]
        %v500 = vld [vmem:[%s492 + $0x1c] sm:$0xf]
        %v501 = vld [vmem:[%s492 + $0x20] sm:$0xf]
        %v502 = vpack.c.bf16 %v491, %v491
        %v512 = vunpack.c.l.b16 %v493
        %v513 = vunpack.c.l.b16 %v494
        %v514 = vunpack.c.l.b16 %v495
        %v515 = vunpack.c.l.b16 %v496
        %v516 = vunpack.c.l.b16 %v497
        %v517 = vunpack.c.l.b16 %v498
        %v518 = vunpack.c.l.b16 %v499
        %v519 = vunpack.c.l.b16 %v500
        %v520 = vunpack.c.l.b16 %v501
        %v521 = vpack.c.b16 %v513, %v512
        %v522 = vpack.c.b16 %v515, %v514
        %v523 = vpack.c.b16 %v517, %v516
        %v524 = vpack.c.b16 %v519, %v518
        %v525 = vpack.c.b16 %v520, %v520
        %v531 = vsel %vm403, %v502, 0
        %v534 = vsel %vm469, %v525, 0
        %536 = vmatpush.bf16.msra.mxu0 0
        %537 = vmatpush.bf16.msra.mxu0 0
        %538 = vmatpush.bf16.msra.mxu0 0
        %539 = vmatpush.bf16.msra.mxu0 %v534
        %540 = vmatpush.bf16.msra.mxu0 %v524
        %541 = vmatpush.bf16.msra.mxu0 %v523
        %542 = vmatpush.bf16.msra.mxu0 %v522
        %543 = vmatpush.bf16.msra.mxu0 %v521
        %544 = vmatmul.bf16.gmra.mxu0 %v531
        %v545 = vpop.f32.mrf.mxu0
        %v546 = vadd.f32 0.0, %v545
        %v547 = vpop.f32.mrf.mxu0
        %548 = vdwg.mxu0
        %v549 = vadd.f32 %v489, %v546
        %s550 = scalar_lea.vmem [#allocation2], 2
        %v551 = vld [vmem:[%s550] ss:$2 sm:$0xff]
        %s552 = scalar_lea.vmem [#allocation4], 72
        %v553 = vld [vmem:[%s552] sm:$0xf]
        %v554 = vld [vmem:[%s552 + $0x4] sm:$0xf]
        %v555 = vld [vmem:[%s552 + $0x8] sm:$0xf]
        %v556 = vld [vmem:[%s552 + $0xc] sm:$0xf]
        %v557 = vld [vmem:[%s552 + $0x10] sm:$0xf]
        %v558 = vld [vmem:[%s552 + $0x14] sm:$0xf]
        %v559 = vld [vmem:[%s552 + $0x18] sm:$0xf]
        %v560 = vld [vmem:[%s552 + $0x1c] sm:$0xf]
        %v561 = vld [vmem:[%s552 + $0x20] sm:$0xf]
        %v562 = vpack.c.bf16 %v551, %v551
        %v572 = vunpack.c.l.b16 %v553
        %v573 = vunpack.c.l.b16 %v554
        %v574 = vunpack.c.l.b16 %v555
        %v575 = vunpack.c.l.b16 %v556
        %v576 = vunpack.c.l.b16 %v557
        %v577 = vunpack.c.l.b16 %v558
        %v578 = vunpack.c.l.b16 %v559
        %v579 = vunpack.c.l.b16 %v560
        %v580 = vunpack.c.l.b16 %v561
        %v581 = vpack.c.b16 %v573, %v572
        %v582 = vpack.c.b16 %v575, %v574
        %v583 = vpack.c.b16 %v577, %v576
        %v584 = vpack.c.b16 %v579, %v578
        %v585 = vpack.c.b16 %v580, %v580
        %v591 = vsel %vm403, %v562, 0
        %v594 = vsel %vm469, %v585, 0
        %596 = vmatpush.bf16.msra.mxu0 0
        %597 = vmatpush.bf16.msra.mxu0 0
        %598 = vmatpush.bf16.msra.mxu0 0
        %599 = vmatpush.bf16.msra.mxu0 %v594
        %600 = vmatpush.bf16.msra.mxu0 %v584
        %601 = vmatpush.bf16.msra.mxu0 %v583
        %602 = vmatpush.bf16.msra.mxu0 %v582
        %603 = vmatpush.bf16.msra.mxu0 %v581
        %604 = vmatmul.bf16.gmra.mxu0 %v591
        %v605 = vpop.f32.mrf.mxu0
        %v606 = vadd.f32 0.0, %v605
        %v607 = vpop.f32.mrf.mxu0
        %608 = vdwg.mxu0
        %v609 = vadd.f32 %v549, %v606
        %v610 = vmax.f32 %v609, 0.0
        %v611 = vld [vmem:[%s5] sm:$0xf]
        %v612 = vld [vmem:[%s5 + $0x4] sm:$0xf]
        %v613 = vld [vmem:[%s5 + $0x8] sm:$0xf]
        %v614 = vld [vmem:[%s5 + $0xc] sm:$0xf]
        %v615 = vld [vmem:[%s5 + $0x10] sm:$0xf]
        %v616 = vld [vmem:[%s5 + $0x14] sm:$0xf]
        %v617 = vld [vmem:[%s5 + $0x18] sm:$0xf]
        %v618 = vld [vmem:[%s5 + $0x1c] sm:$0xf]
        %v619 = vld [vmem:[%s5 + $0x20] sm:$0xf]
        %v620 = vld [vmem:[%s6] sm:$0x1]
        %v622 = vperm.slane %v620, 0
        %v633 = vunpack.c.l.b16 %v611
        %v634 = vunpack.c.l.b16 %v612
        %v635 = vunpack.c.l.b16 %v613
        %v636 = vunpack.c.l.b16 %v614
        %v637 = vunpack.c.l.b16 %v615
        %v638 = vunpack.c.l.b16 %v616
        %v639 = vunpack.c.l.b16 %v617
        %v640 = vunpack.c.l.b16 %v618
        %v641 = vunpack.c.l.b16 %v619
        %v642 = vpack.c.b16 %v634, %v633
        %v643 = vpack.c.b16 %v636, %v635
        %v644 = vpack.c.b16 %v638, %v637
        %v645 = vpack.c.b16 %v640, %v639
        %v646 = vpack.c.b16 %v641, %v641
        %v652 = vsel %vm469, %v646, 0
        %654 = vmatpush.bf16.msra.mxu0 0
        %655 = vmatpush.bf16.msra.mxu0 0
        %656 = vmatpush.bf16.msra.mxu0 0
        %657 = vmatpush.bf16.msra.mxu0 %v652
        %658 = vmatpush.bf16.msra.mxu0 %v645
        %659 = vmatpush.bf16.msra.mxu0 %v644
        %660 = vmatpush.bf16.msra.mxu0 %v643
        %661 = vmatpush.bf16.msra.mxu0 %v642
        %662 = vmatmul.bf16.gmra.mxu0 %v531
        %v663 = vpop.f32.mrf.mxu0
        %v664 = vadd.f32 %v622, %v663
        %v665 = vpop.f32.mrf.mxu0
        %666 = vdwg.mxu0
        %668 = vrot.lane.b32.xlu0 %v610, 8
        %v669 = vpop.permute.xlu0 %668
        %vm671 = vcmask 588864
        %672 = vst.msk [vmem:[#allocation3 + $0x1] sm:$0xff] %vm671, %v669
        %v673 = vld [vmem:[%s4] sm:$0x1]
        %v674 = vld [vmem:[#allocation3] sm:$0xff]
        %v675 = vld [vmem:[%s3] sm:$0xf]
        %v676 = vld [vmem:[%s3 + $0x4] sm:$0xf]
        %v677 = vld [vmem:[%s3 + $0x8] sm:$0xf]
        %v678 = vld [vmem:[%s3 + $0xc] sm:$0xf]
        %v679 = vld [vmem:[%s3 + $0x10] sm:$0xf]
        %v680 = vld [vmem:[%s3 + $0x14] sm:$0xf]
        %v681 = vld [vmem:[%s3 + $0x18] sm:$0xf]
        %v682 = vld [vmem:[%s3 + $0x1c] sm:$0xf]
        %v683 = vld [vmem:[%s3 + $0x20] sm:$0xf]
        %v684 = vld [vmem:[%s3 + $0x24] sm:$0xf]
        %v685 = vpack.c.bf16 %v674, %v674
        %v696 = vunpack.c.l.b16 %v675
        %v697 = vunpack.c.l.b16 %v676
        %v698 = vunpack.c.l.b16 %v677
        %v699 = vunpack.c.l.b16 %v678
        %v700 = vunpack.c.l.b16 %v679
        %v701 = vunpack.c.l.b16 %v680
        %v702 = vunpack.c.l.b16 %v681
        %v703 = vunpack.c.l.b16 %v682
        %v704 = vunpack.c.l.b16 %v683
        %v705 = vunpack.c.l.b16 %v684
        %v706 = vpack.c.b16 %v697, %v696
        %v707 = vpack.c.b16 %v699, %v698
        %v708 = vpack.c.b16 %v701, %v700
        %v709 = vpack.c.b16 %v703, %v702
        %v710 = vpack.c.b16 %v705, %v704
        %v717 = vsel %vm408, %v685, 0
        %719 = vmatpush.bf16.msra.mxu0 0
        %720 = vmatpush.bf16.msra.mxu0 0
        %721 = vmatpush.bf16.msra.mxu0 0
        %722 = vmatpush.bf16.msra.mxu0 %v710
        %723 = vmatpush.bf16.msra.mxu0 %v709
        %724 = vmatpush.bf16.msra.mxu0 %v708
        %725 = vmatpush.bf16.msra.mxu0 %v707
        %726 = vmatpush.bf16.msra.mxu0 %v706
        %727 = vmatmul.bf16.gmra.mxu0 %v717
        %v728 = vpop.f32.mrf.mxu0
        %v729 = vadd.f32 0.0, %v728
        %v730 = vpop.f32.mrf.mxu0
        %731 = vdwg.mxu0
        %v733 = vperm.slane %v673, 0
        %v735 = vadd.f32 %v733, %v729
        %v736 = vld [vmem:[#allocation3 + $0x1] sm:$0xff]
        %s737 = scalar_lea.vmem %s3, 40
        %v738 = vld [vmem:[%s737] sm:$0xf]
        %v739 = vld [vmem:[%s737 + $0x4] sm:$0xf]
        %v740 = vld [vmem:[%s737 + $0x8] sm:$0xf]
        %v741 = vld [vmem:[%s737 + $0xc] sm:$0xf]
        %v742 = vld [vmem:[%s737 + $0x10] sm:$0xf]
        %v743 = vld [vmem:[%s737 + $0x14] sm:$0xf]
        %v744 = vld [vmem:[%s737 + $0x18] sm:$0xf]
        %v745 = vld [vmem:[%s737 + $0x1c] sm:$0xf]
        %v746 = vld [vmem:[%s737 + $0x20] sm:$0xf]
        %v747 = vld [vmem:[%s737 + $0x24] sm:$0xf]
        %v748 = vpack.c.bf16 %v736, %v736
        %v759 = vunpack.c.l.b16 %v738
        %v760 = vunpack.c.l.b16 %v739
        %v761 = vunpack.c.l.b16 %v740
        %v762 = vunpack.c.l.b16 %v741
        %v763 = vunpack.c.l.b16 %v742
        %v764 = vunpack.c.l.b16 %v743
        %v765 = vunpack.c.l.b16 %v744
        %v766 = vunpack.c.l.b16 %v745
        %v767 = vunpack.c.l.b16 %v746
        %v768 = vunpack.c.l.b16 %v747
        %v769 = vpack.c.b16 %v760, %v759
        %v770 = vpack.c.b16 %v762, %v761
        %v771 = vpack.c.b16 %v764, %v763
        %v772 = vpack.c.b16 %v766, %v765
        %v773 = vpack.c.b16 %v768, %v767
        %v780 = vsel %vm408, %v748, 0
        %782 = vmatpush.bf16.msra.mxu0 0
        %783 = vmatpush.bf16.msra.mxu0 0
        %784 = vmatpush.bf16.msra.mxu0 0
        %785 = vmatpush.bf16.msra.mxu0 %v773
        %786 = vmatpush.bf16.msra.mxu0 %v772
        %787 = vmatpush.bf16.msra.mxu0 %v771
        %788 = vmatpush.bf16.msra.mxu0 %v770
        %789 = vmatpush.bf16.msra.mxu0 %v769
        %790 = vmatmul.bf16.gmra.mxu0 %v780
        %v791 = vpop.f32.mrf.mxu0
        %v792 = vadd.f32 0.0, %v791
        %v793 = vpop.f32.mrf.mxu0
        %794 = vdwg.mxu0
        %v795 = vadd.f32 %v735, %v792
        %v796 = vld [vmem:[#allocation3 + $0x2] sm:$0xff]
        %s797 = scalar_lea.vmem %s3, 80
        %v798 = vld [vmem:[%s797] sm:$0xf]
        %v799 = vld [vmem:[%s797 + $0x4] sm:$0xf]
        %v800 = vld [vmem:[%s797 + $0x8] sm:$0xf]
        %v801 = vld [vmem:[%s797 + $0xc] sm:$0xf]
        %v802 = vld [vmem:[%s797 + $0x10] sm:$0xf]
        %v803 = vld [vmem:[%s797 + $0x14] sm:$0xf]
        %v804 = vld [vmem:[%s797 + $0x18] sm:$0xf]
        %v805 = vld [vmem:[%s797 + $0x1c] sm:$0xf]
        %v806 = vld [vmem:[%s797 + $0x20] sm:$0xf]
        %v807 = vld [vmem:[%s797 + $0x24] sm:$0xf]
        %v808 = vpack.c.bf16 %v796, %v796
        %v819 = vunpack.c.l.b16 %v798
        %v820 = vunpack.c.l.b16 %v799
        %v821 = vunpack.c.l.b16 %v800
        %v822 = vunpack.c.l.b16 %v801
        %v823 = vunpack.c.l.b16 %v802
        %v824 = vunpack.c.l.b16 %v803
        %v825 = vunpack.c.l.b16 %v804
        %v826 = vunpack.c.l.b16 %v805
        %v827 = vunpack.c.l.b16 %v806
        %v828 = vunpack.c.l.b16 %v807
        %v829 = vpack.c.b16 %v820, %v819
        %v830 = vpack.c.b16 %v822, %v821
        %v831 = vpack.c.b16 %v824, %v823
        %v832 = vpack.c.b16 %v826, %v825
        %v833 = vpack.c.b16 %v828, %v827
        %v840 = vsel %vm408, %v808, 0
        %842 = vmatpush.bf16.msra.mxu0 0
        %843 = vmatpush.bf16.msra.mxu0 0
        %844 = vmatpush.bf16.msra.mxu0 0
        %845 = vmatpush.bf16.msra.mxu0 %v833
        %846 = vmatpush.bf16.msra.mxu0 %v832
        %847 = vmatpush.bf16.msra.mxu0 %v831
        %848 = vmatpush.bf16.msra.mxu0 %v830
        %849 = vmatpush.bf16.msra.mxu0 %v829
        %850 = vmatmul.bf16.gmra.mxu0 %v840
        %v851 = vpop.f32.mrf.mxu0
        %v852 = vadd.f32 0.0, %v851
        %v853 = vpop.f32.mrf.mxu0
        %854 = vdwg.mxu0
        %v855 = vadd.f32 %v795, %v852
        %v856 = vadd.f32 %v855, %v664
        %v857 = vmax.f32 %v856, 0.0
        %859 = vrot.lane.b32.xlu0 %v857, 8
        %v860 = vpop.permute.xlu0 %859
        %862 = vst.msk [vmem:[#allocation3 + $0x1] sm:$0xff] %vm671, %v860
        %v863 = vld [vmem:[%s8] sm:$0x1]
        %v864 = vld [vmem:[#allocation3] sm:$0xff]
        %v865 = vld [vmem:[%s7] sm:$0xf]
        %v866 = vld [vmem:[%s7 + $0x4] sm:$0xf]
        %v867 = vld [vmem:[%s7 + $0x8] sm:$0xf]
        %v868 = vld [vmem:[%s7 + $0xc] sm:$0xf]
        %v869 = vld [vmem:[%s7 + $0x10] sm:$0xf]
        %v870 = vld [vmem:[%s7 + $0x14] sm:$0xf]
        %v871 = vld [vmem:[%s7 + $0x18] sm:$0xf]
        %v872 = vld [vmem:[%s7 + $0x1c] sm:$0xf]
        %v873 = vld [vmem:[%s7 + $0x20] sm:$0xf]
        %v874 = vld [vmem:[%s7 + $0x24] sm:$0xf]
        %v875 = vpack.c.bf16 %v864, %v864
        %v886 = vunpack.c.l.b16 %v865
        %v887 = vunpack.c.l.b16 %v866
        %v888 = vunpack.c.l.b16 %v867
        %v889 = vunpack.c.l.b16 %v868
        %v890 = vunpack.c.l.b16 %v869
        %v891 = vunpack.c.l.b16 %v870
        %v892 = vunpack.c.l.b16 %v871
        %v893 = vunpack.c.l.b16 %v872
        %v894 = vunpack.c.l.b16 %v873
        %v895 = vunpack.c.l.b16 %v874
        %v896 = vpack.c.b16 %v887, %v886
        %v897 = vpack.c.b16 %v889, %v888
        %v898 = vpack.c.b16 %v891, %v890
        %v899 = vpack.c.b16 %v893, %v892
        %v900 = vpack.c.b16 %v895, %v894
        %v907 = vsel %vm408, %v875, 0
        %909 = vmatpush.bf16.msra.mxu0 0
        %910 = vmatpush.bf16.msra.mxu0 0
        %911 = vmatpush.bf16.msra.mxu0 0
        %912 = vmatpush.bf16.msra.mxu0 %v900
        %913 = vmatpush.bf16.msra.mxu0 %v899
        %914 = vmatpush.bf16.msra.mxu0 %v898
        %915 = vmatpush.bf16.msra.mxu0 %v897
        %916 = vmatpush.bf16.msra.mxu0 %v896
        %917 = vmatmul.bf16.gmra.mxu0 %v907
        %v918 = vpop.f32.mrf.mxu0
        %v919 = vadd.f32 0.0, %v918
        %v920 = vpop.f32.mrf.mxu0
        %921 = vdwg.mxu0
        %v923 = vperm.slane %v863, 0
        %v925 = vadd.f32 %v923, %v919
        %v926 = vld [vmem:[#allocation3 + $0x1] sm:$0xff]
        %s927 = scalar_lea.vmem %s7, 40
        %v928 = vld [vmem:[%s927] sm:$0xf]
        %v929 = vld [vmem:[%s927 + $0x4] sm:$0xf]
        %v930 = vld [vmem:[%s927 + $0x8] sm:$0xf]
        %v931 = vld [vmem:[%s927 + $0xc] sm:$0xf]
        %v932 = vld [vmem:[%s927 + $0x10] sm:$0xf]
        %v933 = vld [vmem:[%s927 + $0x14] sm:$0xf]
        %v934 = vld [vmem:[%s927 + $0x18] sm:$0xf]
        %v935 = vld [vmem:[%s927 + $0x1c] sm:$0xf]
        %v936 = vld [vmem:[%s927 + $0x20] sm:$0xf]
        %v937 = vld [vmem:[%s927 + $0x24] sm:$0xf]
        %v938 = vpack.c.bf16 %v926, %v926
        %v949 = vunpack.c.l.b16 %v928
        %v950 = vunpack.c.l.b16 %v929
        %v951 = vunpack.c.l.b16 %v930
        %v952 = vunpack.c.l.b16 %v931
        %v953 = vunpack.c.l.b16 %v932
        %v954 = vunpack.c.l.b16 %v933
        %v955 = vunpack.c.l.b16 %v934
        %v956 = vunpack.c.l.b16 %v935
        %v957 = vunpack.c.l.b16 %v936
        %v958 = vunpack.c.l.b16 %v937
        %v959 = vpack.c.b16 %v950, %v949
        %v960 = vpack.c.b16 %v952, %v951
        %v961 = vpack.c.b16 %v954, %v953
        %v962 = vpack.c.b16 %v956, %v955
        %v963 = vpack.c.b16 %v958, %v957
        %v970 = vsel %vm408, %v938, 0
        %972 = vmatpush.bf16.msra.mxu0 0
        %973 = vmatpush.bf16.msra.mxu0 0
        %974 = vmatpush.bf16.msra.mxu0 0
        %975 = vmatpush.bf16.msra.mxu0 %v963
        %976 = vmatpush.bf16.msra.mxu0 %v962
        %977 = vmatpush.bf16.msra.mxu0 %v961
        %978 = vmatpush.bf16.msra.mxu0 %v960
        %979 = vmatpush.bf16.msra.mxu0 %v959
        %980 = vmatmul.bf16.gmra.mxu0 %v970
        %v981 = vpop.f32.mrf.mxu0
        %v982 = vadd.f32 0.0, %v981
        %v983 = vpop.f32.mrf.mxu0
        %984 = vdwg.mxu0
        %v985 = vadd.f32 %v925, %v982
        %v986 = vld [vmem:[#allocation3 + $0x2] sm:$0xff]
        %s987 = scalar_lea.vmem %s7, 80
        %v988 = vld [vmem:[%s987] sm:$0xf]
        %v989 = vld [vmem:[%s987 + $0x4] sm:$0xf]
        %v990 = vld [vmem:[%s987 + $0x8] sm:$0xf]
        %v991 = vld [vmem:[%s987 + $0xc] sm:$0xf]
        %v992 = vld [vmem:[%s987 + $0x10] sm:$0xf]
        %v993 = vld [vmem:[%s987 + $0x14] sm:$0xf]
        %v994 = vld [vmem:[%s987 + $0x18] sm:$0xf]
        %v995 = vld [vmem:[%s987 + $0x1c] sm:$0xf]
        %v996 = vld [vmem:[%s987 + $0x20] sm:$0xf]
        %v997 = vld [vmem:[%s987 + $0x24] sm:$0xf]
        %v998 = vpack.c.bf16 %v986, %v986
        %v1009 = vunpack.c.l.b16 %v988
        %v1010 = vunpack.c.l.b16 %v989
        %v1011 = vunpack.c.l.b16 %v990
        %v1012 = vunpack.c.l.b16 %v991
        %v1013 = vunpack.c.l.b16 %v992
        %v1014 = vunpack.c.l.b16 %v993
        %v1015 = vunpack.c.l.b16 %v994
        %v1016 = vunpack.c.l.b16 %v995
        %v1017 = vunpack.c.l.b16 %v996
        %v1018 = vunpack.c.l.b16 %v997
        %v1019 = vpack.c.b16 %v1010, %v1009
        %v1020 = vpack.c.b16 %v1012, %v1011
        %v1021 = vpack.c.b16 %v1014, %v1013
        %v1022 = vpack.c.b16 %v1016, %v1015
        %v1023 = vpack.c.b16 %v1018, %v1017
        %v1030 = vsel %vm408, %v998, 0
        %1032 = vmatpush.bf16.msra.mxu0 0
        %1033 = vmatpush.bf16.msra.mxu0 0
        %1034 = vmatpush.bf16.msra.mxu0 0
        %1035 = vmatpush.bf16.msra.mxu0 %v1023
        %1036 = vmatpush.bf16.msra.mxu0 %v1022
        %1037 = vmatpush.bf16.msra.mxu0 %v1021
        %1038 = vmatpush.bf16.msra.mxu0 %v1020
        %1039 = vmatpush.bf16.msra.mxu0 %v1019
        %1040 = vmatmul.bf16.gmra.mxu0 %v1030
        %v1041 = vpop.f32.mrf.mxu0
        %v1042 = vadd.f32 0.0, %v1041
        %v1043 = vpop.f32.mrf.mxu0
        %1044 = vdwg.mxu0
        %v1045 = vadd.f32 %v985, %v1042
        %v1046 = vmax.f32 %v1045, 0.0
        %1048 = vrot.lane.b32.xlu0 %v1046, 8
        %v1049 = vpop.permute.xlu0 %1048
        %1051 = vst.msk [vmem:[#allocation3 + $0x1] sm:$0xff] %vm671, %v1049
        %v1052 = vld [vmem:[%s10] sm:$0x1]
        %v1053 = vld [vmem:[#allocation3] sm:$0xff]
        %v1054 = vld [vmem:[%s9] sm:$0xf]
        %v1055 = vld [vmem:[%s9 + $0x4] sm:$0xf]
        %v1056 = vld [vmem:[%s9 + $0x8] sm:$0xf]
        %v1057 = vld [vmem:[%s9 + $0xc] sm:$0xf]
        %v1058 = vld [vmem:[%s9 + $0x10] sm:$0xf]
        %v1059 = vld [vmem:[%s9 + $0x14] sm:$0xf]
        %v1060 = vld [vmem:[%s9 + $0x18] sm:$0xf]
        %v1061 = vld [vmem:[%s9 + $0x1c] sm:$0xf]
        %v1062 = vld [vmem:[%s9 + $0x20] sm:$0xf]
        %v1063 = vld [vmem:[%s9 + $0x24] sm:$0xf]
        %v1064 = vpack.c.bf16 %v1053, %v1053
        %v1075 = vunpack.c.l.b16 %v1054
        %v1076 = vunpack.c.l.b16 %v1055
        %v1077 = vunpack.c.l.b16 %v1056
        %v1078 = vunpack.c.l.b16 %v1057
        %v1079 = vunpack.c.l.b16 %v1058
        %v1080 = vunpack.c.l.b16 %v1059
        %v1081 = vunpack.c.l.b16 %v1060
        %v1082 = vunpack.c.l.b16 %v1061
        %v1083 = vunpack.c.l.b16 %v1062
        %v1084 = vunpack.c.l.b16 %v1063
        %v1085 = vpack.c.b16 %v1076, %v1075
        %v1086 = vpack.c.b16 %v1078, %v1077
        %v1087 = vpack.c.b16 %v1080, %v1079
        %v1088 = vpack.c.b16 %v1082, %v1081
        %v1089 = vpack.c.b16 %v1084, %v1083
        %v1096 = vsel %vm408, %v1064, 0
        %1098 = vmatpush.bf16.msra.mxu0 0
        %1099 = vmatpush.bf16.msra.mxu0 0
        %1100 = vmatpush.bf16.msra.mxu0 0
        %1101 = vmatpush.bf16.msra.mxu0 %v1089
        %1102 = vmatpush.bf16.msra.mxu0 %v1088
        %1103 = vmatpush.bf16.msra.mxu0 %v1087
        %1104 = vmatpush.bf16.msra.mxu0 %v1086
        %1105 = vmatpush.bf16.msra.mxu0 %v1085
        %1106 = vmatmul.bf16.gmra.mxu0 %v1096
        %v1107 = vpop.f32.mrf.mxu0
        %v1108 = vadd.f32 0.0, %v1107
        %v1109 = vpop.f32.mrf.mxu0
        %1110 = vdwg.mxu0
        %v1112 = vperm.slane %v1052, 0
        %v1114 = vadd.f32 %v1112, %v1108
        %v1115 = vld [vmem:[#allocation3 + $0x1] sm:$0xff]
        %s1116 = scalar_lea.vmem %s9, 40
        %v1117 = vld [vmem:[%s1116] sm:$0xf]
        %v1118 = vld [vmem:[%s1116 + $0x4] sm:$0xf]
        %v1119 = vld [vmem:[%s1116 + $0x8] sm:$0xf]
        %v1120 = vld [vmem:[%s1116 + $0xc] sm:$0xf]
        %v1121 = vld [vmem:[%s1116 + $0x10] sm:$0xf]
        %v1122 = vld [vmem:[%s1116 + $0x14] sm:$0xf]
        %v1123 = vld [vmem:[%s1116 + $0x18] sm:$0xf]
        %v1124 = vld [vmem:[%s1116 + $0x1c] sm:$0xf]
        %v1125 = vld [vmem:[%s1116 + $0x20] sm:$0xf]
        %v1126 = vld [vmem:[%s1116 + $0x24] sm:$0xf]
        %v1127 = vpack.c.bf16 %v1115, %v1115
        %v1138 = vunpack.c.l.b16 %v1117
        %v1139 = vunpack.c.l.b16 %v1118
        %v1140 = vunpack.c.l.b16 %v1119
        %v1141 = vunpack.c.l.b16 %v1120
        %v1142 = vunpack.c.l.b16 %v1121
        %v1143 = vunpack.c.l.b16 %v1122
        %v1144 = vunpack.c.l.b16 %v1123
        %v1145 = vunpack.c.l.b16 %v1124
        %v1146 = vunpack.c.l.b16 %v1125
        %v1147 = vunpack.c.l.b16 %v1126
        %v1148 = vpack.c.b16 %v1139, %v1138
        %v1149 = vpack.c.b16 %v1141, %v1140
        %v1150 = vpack.c.b16 %v1143, %v1142
        %v1151 = vpack.c.b16 %v1145, %v1144
        %v1152 = vpack.c.b16 %v1147, %v1146
        %v1159 = vsel %vm408, %v1127, 0
        %1161 = vmatpush.bf16.msra.mxu0 0
        %1162 = vmatpush.bf16.msra.mxu0 0
        %1163 = vmatpush.bf16.msra.mxu0 0
        %1164 = vmatpush.bf16.msra.mxu0 %v1152
        %1165 = vmatpush.bf16.msra.mxu0 %v1151
        %1166 = vmatpush.bf16.msra.mxu0 %v1150
        %1167 = vmatpush.bf16.msra.mxu0 %v1149
        %1168 = vmatpush.bf16.msra.mxu0 %v1148
        %1169 = vmatmul.bf16.gmra.mxu0 %v1159
        %v1170 = vpop.f32.mrf.mxu0
        %v1171 = vadd.f32 0.0, %v1170
        %v1172 = vpop.f32.mrf.mxu0
        %1173 = vdwg.mxu0
        %v1174 = vadd.f32 %v1114, %v1171
        %v1175 = vld [vmem:[#allocation3 + $0x2] sm:$0xff]
        %s1176 = scalar_lea.vmem %s9, 80
        %v1177 = vld [vmem:[%s1176] sm:$0xf]
        %v1178 = vld [vmem:[%s1176 + $0x4] sm:$0xf]
        %v1179 = vld [vmem:[%s1176 + $0x8] sm:$0xf]
        %v1180 = vld [vmem:[%s1176 + $0xc] sm:$0xf]
        %v1181 = vld [vmem:[%s1176 + $0x10] sm:$0xf]
        %v1182 = vld [vmem:[%s1176 + $0x14] sm:$0xf]
        %v1183 = vld [vmem:[%s1176 + $0x18] sm:$0xf]
        %v1184 = vld [vmem:[%s1176 + $0x1c] sm:$0xf]
        %v1185 = vld [vmem:[%s1176 + $0x20] sm:$0xf]
        %v1186 = vld [vmem:[%s1176 + $0x24] sm:$0xf]
        %v1187 = vpack.c.bf16 %v1175, %v1175
        %v1198 = vunpack.c.l.b16 %v1177
        %v1199 = vunpack.c.l.b16 %v1178
        %v1200 = vunpack.c.l.b16 %v1179
        %v1201 = vunpack.c.l.b16 %v1180
        %v1202 = vunpack.c.l.b16 %v1181
        %v1203 = vunpack.c.l.b16 %v1182
        %v1204 = vunpack.c.l.b16 %v1183
        %v1205 = vunpack.c.l.b16 %v1184
        %v1206 = vunpack.c.l.b16 %v1185
        %v1207 = vunpack.c.l.b16 %v1186
        %v1208 = vpack.c.b16 %v1199, %v1198
        %v1209 = vpack.c.b16 %v1201, %v1200
        %v1210 = vpack.c.b16 %v1203, %v1202
        %v1211 = vpack.c.b16 %v1205, %v1204
        %v1212 = vpack.c.b16 %v1207, %v1206
        %v1219 = vsel %vm408, %v1187, 0
        %1221 = vmatpush.bf16.msra.mxu0 0
        %1222 = vmatpush.bf16.msra.mxu0 0
        %1223 = vmatpush.bf16.msra.mxu0 0
        %1224 = vmatpush.bf16.msra.mxu0 %v1212
        %1225 = vmatpush.bf16.msra.mxu0 %v1211
        %1226 = vmatpush.bf16.msra.mxu0 %v1210
        %1227 = vmatpush.bf16.msra.mxu0 %v1209
        %1228 = vmatpush.bf16.msra.mxu0 %v1208
        %1229 = vmatmul.bf16.gmra.mxu0 %v1219
        %v1230 = vpop.f32.mrf.mxu0
        %v1231 = vadd.f32 0.0, %v1230
        %v1232 = vpop.f32.mrf.mxu0
        %1233 = vdwg.mxu0
        %v1234 = vadd.f32 %v1174, %v1231
        %v1235 = vadd.f32 %v1234, %v857
        %v1236 = vmax.f32 %v1235, 0.0
        %v1237 = vpack.c.bf16 %v1236, %v1236
        %vm1238 = vcmask 519168
        %1239 = vst.msk [vmem:[%s401] sm:$0xf] %vm1238, %v1237
        %p1240 = scmp.lt.s32.totalorder %s23, 1
        %s1241 = scalar_select %p1240, %s23, 1
        %s1242 = smul.addr %s1241, 4
        %s1243 = scalar_lea.vmem %s11, %s1242
        // Predicated region
        $region69: #{_lambda_.1} parent=63 // pred_check
          %p1244 = pneg %p277
        $region70: #{_lambda_.1} parent=63 // pred_check_branch
          %1246 = sbr.rel (%p1244) target = $region72
        $region71: #{_lambda_.1} parent=63 // pred_region
          _
        $region72: #{_lambda_.1} parent=63 // pred_fallthru
          _
      $region64: #{_lambda_.1} parent=5 // pred_fallthru
        _
      %p1247 = scmp.le.s32.totalorder 2, %s18
      // Predicated region
      $region73: #{_lambda_.1} parent=5 // pred_check
        %p1248 = pneg %p1247
      $region74: #{_lambda_.1} parent=5 // pred_check_branch
        %1250 = sbr.rel (%p1248) target = $region76
      $region75: #{_lambda_.1} parent=5 // pred_region
        %s1251 = ssub.s32 %s18, 2
        // Predicated region
        $region77: #{_lambda_.1} parent=75 // pred_check
          %p1252 = pneg %p283
        $region78: #{_lambda_.1} parent=75 // pred_check_branch
          %1254 = sbr.rel (%p1252) target = $region80
        $region79: #{_lambda_.1} parent=75 // pred_region
          %p1255 = scmp.lt.s32.totalorder %s24, 1
          %s1256 = scalar_select %p1255, %s24, 1
          %s1257 = smul.addr %s1256, 4
          %s1258 = scalar_lea.vmem %s11, %s1257
        $region80: #{_lambda_.1} parent=75 // pred_fallthru
          _
      $region76: #{_lambda_.1} parent=5 // pred_fallthru
        _
    $region6: #{_lambda_.1} parent=1 // loop_footer
      %s22 = sadd.s32 1, %s18
    $region7: #{_lambda_.1} parent=1 // loop_footer_branch
      %17 = sbr.rel target = $region3
    $region8: #{_lambda_.1} parent=1 // loop_exit
      _
    %1259 = vsyncpa [#allocation5], 1
    %s1260 = scalar_lea.sflag [#allocation5], 1
    %1261 = vsyncpa %s1260, 1

</llo_original>
